<compile_context>
chip_gen: v5e
topology: v5e:2x2
jax: 0.10.0
libtpu: 0.0.40
codegen_flags: <defaults>
</compile_context>

<pallas_src>
import math

import jax
import jax.numpy as jnp
from jax import lax
from jax.experimental import pallas as pl
from jax.experimental.pallas import tpu as pltpu


def bigru_kernel(x_ref, wih_ref, bih_ref, whh_ref, bhn_ref, out_ref,
                 xg_ref, fwd_ref, bwd_ref):
    """One batch block of the bidirectional GRU.

    x_ref   : (T, Bb, D)      bf16 time-major input block
    wih_ref : (2, D, 3D)      bf16 input weights per direction, gates [r z n]
    bih_ref : (2, 1, 3D)      f32 b_ih with b_hr/b_hz folded in (b_in only for n)
    whh_ref : (2, D, 3D)      bf16 hidden weights per direction (pre-transposed)
    bhn_ref : (2, 1, 3D)      f32 zeros on r/z lanes, b_hn on n lanes
    out_ref : (T, Bb*D)       f32 merged (fwd + bwd) hidden states, lane-dense
    xg_ref  : (2, T, Bb, 3D)  f32 scratch: fused per-step input projections
    fwd_ref : (T, Bb, D)      f32 scratch: forward hidden states
    bwd_ref : (T, Bb, D)      f32 scratch: backward hidden states
    """
    T, Bb, D = fwd_ref.shape
    f32 = jnp.float32

    # ---- bulk input projection: one (T*Bb, D) x (D, 3D) matmul per direction ----
    xt = x_ref[...].reshape(T * Bb, D)           # merges leading dims only (free)
    for d in range(2):
        proj = jnp.dot(xt, wih_ref[d], preferred_element_type=f32) + bih_ref[d]
        xg_ref[d] = proj.reshape(T, Bb, 3 * D)   # f32, no lane slicing in the fill

    def cell(d, t, h):
        # One fused (Bb, D) x (D, 3D) bf16 hidden matmul per direction per step;
        # whh/bhn are read from VMEM in-loop (loads hide under MXU latency).
        hg = jnp.dot(h.astype(whh_ref.dtype), whh_ref[d],
                     preferred_element_type=f32) + bhn_ref[d]   # n lanes carry b_hn
        xg = xg_ref[d, t]                                       # single (Bb, 3D) load
        rz = jax.nn.sigmoid(xg[:, :2 * D] + hg[:, :2 * D])
        r = rz[:, :D]
        z = rz[:, D:]
        n = jnp.tanh(xg[:, 2 * D:] + r * hg[:, 2 * D:])         # b_hn inside r-multiply
        return (1.0 - z) * n + z * h

    def step(t, carry):
        # two independent dependence chains per iteration: fwd @ t, bwd @ T-1-t
        h_f, h_b = carry
        tb = T - 1 - t
        h_f = cell(0, t, h_f)
        h_b = cell(1, tb, h_b)
        fwd_ref[t] = h_f
        bwd_ref[tb] = h_b
        return h_f, h_b

    h0 = jnp.zeros((Bb, D), f32)
    if T <= 16:
        hf, hb = h0, h0
        for t in range(T):                       # full unroll, all-static indexing
            hf, hb = step(t, (hf, hb))
    else:
        lax.fori_loop(0, T, step, (h0, h0), unroll=2)

    # ---- merge directions, single lane-dense writeback ----
    merged = fwd_ref[...] + bwd_ref[...]                         # (T, Bb, D)
    out_ref[...] = merged.reshape(T, Bb * D).astype(out_ref.dtype)


def _vmem_capacity_bytes():
    try:
        return int(pltpu.get_tpu_info().vmem_capacity_bytes)
    except Exception:
        return 64 * 2 ** 20          # conservative (v7x-safe) fallback


def _pick_batch_block(B, T, D, budget_bytes):
    """Largest batch block that fits the VMEM budget with aligned blocks."""
    # per batch row: x(bf16)+out(f32) double-buffered blocks + xg/fwd/bwd f32 scratch
    per_row = T * D * (2 * 2 + 2 * 4 + 6 * 4 + 2 * 4)
    b = min(B, 128, max(1, budget_bytes // per_row))
    if b >= B:
        return B
    # multiple of 8 (sublane / MXU-M fill) and of 128/gcd(128, D) (lane-dense out block)
    a = 128 // math.gcd(128, D)
    a = a * (8 // math.gcd(8, a))                # lcm(a, 8)
    if a <= b:
        return (b // a) * a
    return B                                     # cannot split cleanly -> single block


def make_gru_params(rnn_dim, key):
    """Deterministic PyTorch-style uniform(-1/sqrt(H), 1/sqrt(H)) init."""
    k = 1.0 / math.sqrt(rnn_dim)
    keys = jax.random.split(key, 8)

    def u(kk, shape):
        return jax.random.uniform(kk, shape, jnp.float32, minval=-k, maxval=k)

    return {
        "w_ih_f": u(keys[0], (3 * rnn_dim, rnn_dim)),
        "w_hh_f": u(keys[1], (3 * rnn_dim, rnn_dim)),
        "b_ih_f": u(keys[2], (3 * rnn_dim,)),
        "b_hh_f": u(keys[3], (3 * rnn_dim,)),
        "w_ih_b": u(keys[4], (3 * rnn_dim, rnn_dim)),
        "w_hh_b": u(keys[5], (3 * rnn_dim, rnn_dim)),
        "b_ih_b": u(keys[6], (3 * rnn_dim,)),
        "b_hh_b": u(keys[7], (3 * rnn_dim,)),
    }


def gru_rnn_module_a(word_embs, params, return_seq=True):
    """Pallas implementation of GRURNNModuleA.forward (eval mode)."""
    B, T, D = word_embs.shape
    f32, bf16 = jnp.float32, jnp.bfloat16

    # --- per-direction weights, gates [r, z, n] concatenated on the output axis ---
    w_ih = jnp.stack([params["w_ih_f"].T, params["w_ih_b"].T]).astype(bf16)   # (2, D, 3D)
    w_hh = jnp.stack([params["w_hh_f"].T, params["w_hh_b"].T]).astype(bf16)   # (2, D, 3D)

    def fold_ih(b_ih, b_hh):
        # b_hr / b_hz folded into the precomputed projection; b_hn stays separate
        return jnp.concatenate([b_ih[:2 * D] + b_hh[:2 * D], b_ih[2 * D:]])

    def n_only(b_hh):
        return jnp.concatenate([jnp.zeros((2 * D,), f32), b_hh[2 * D:]])

    b_ih = jnp.stack([fold_ih(params["b_ih_f"], params["b_hh_f"]),
                      fold_ih(params["b_ih_b"], params["b_hh_b"])]
                     )[:, None, :].astype(f32)                                # (2, 1, 3D)
    b_hn = jnp.stack([n_only(params["b_hh_f"]),
                      n_only(params["b_hh_b"])])[:, None, :].astype(f32)      # (2, 1, 3D)

    # time-major bf16 activations: kernel never transposes; prologue reshape is free
    x_t = jnp.transpose(word_embs, (1, 0, 2)).astype(bf16)                    # (T, B, D)

    # --- size the batch block from the chip's actual VMEM capacity (v7x = 64 MiB) ---
    cap = _vmem_capacity_bytes()
    weight_bytes = 2 * (w_ih.size * 2 + w_hh.size * 2 + b_ih.size * 4 + b_hn.size * 4)
    budget = max(1 << 20, int(0.7 * cap) - weight_bytes - (6 << 20))
    b_blk = _pick_batch_block(B, T, D, budget)
    grid = (pl.cdiv(B, b_blk),)

    used = (weight_bytes
            + b_blk * T * D * (2 * 2 + 2 * 4)          # x + out blocks, double-buffered
            + b_blk * T * D * (6 * 4 + 2 * 4))         # xg + fwd + bwd scratches
    vmem_limit = int(min(cap - (4 << 20), max(used + (8 << 20), 32 << 20)))

    out_flat = pl.pallas_call(
        bigru_kernel,
        out_shape=jax.ShapeDtypeStruct((T, B * D), f32),
        grid=grid,
        in_specs=[
            pl.BlockSpec((T, b_blk, D), lambda b: (0, b, 0)),
            pl.BlockSpec((2, D, 3 * D), lambda b: (0, 0, 0)),
            pl.BlockSpec((2, 1, 3 * D), lambda b: (0, 0, 0)),
            pl.BlockSpec((2, D, 3 * D), lambda b: (0, 0, 0)),
            pl.BlockSpec((2, 1, 3 * D), lambda b: (0, 0, 0)),
        ],
        out_specs=pl.BlockSpec((T, b_blk * D), lambda b: (0, b)),
        scratch_shapes=[
            pltpu.VMEM((2, T, b_blk, 3 * D), f32),     # fused input projections
            pltpu.VMEM((T, b_blk, D), f32),            # forward hidden states
            pltpu.VMEM((T, b_blk, D), f32),            # backward hidden states
        ],
        compiler_params=pltpu.CompilerParams(
            dimension_semantics=("parallel",),
            vmem_limit_bytes=vmem_limit,
        ),
    )(x_t, w_ih, b_ih, w_hh, b_hn)

    out = jnp.transpose(out_flat.reshape(T, B, D), (1, 0, 2))   # back to batch-first
    if not return_seq:
        out = out[:, -1, :]
    return out


def gru_rnn_module_a_ref(word_embs, params, return_seq=True):
    """Pure-JAX f32 reference for correctness checking."""
    x = word_embs.astype(jnp.float32)
    B, T, D = x.shape

    def run_dir(xs, wih, whh, bih, bhh):
        def step(h, x_t):
            xg = x_t @ wih.T + bih
            hg = h @ whh.T + bhh
            r = jax.nn.sigmoid(xg[:, :D] + hg[:, :D])
            z = jax.nn.sigmoid(xg[:, D:2 * D] + hg[:, D:2 * D])
            n = jnp.tanh(xg[:, 2 * D:] + r * hg[:, 2 * D:])
            h = (1.0 - z) * n + z * h
            return h, h
        h0 = jnp.zeros((B, D), jnp.float32)
        _, hs = jax.lax.scan(step, h0, jnp.transpose(xs, (1, 0, 2)))
        return jnp.transpose(hs, (1, 0, 2))

    fwd = run_dir(x, params["w_ih_f"], params["w_hh_f"],
                  params["b_ih_f"], params["b_hh_f"])
    bwd = run_dir(x[:, ::-1, :], params["w_ih_b"], params["w_hh_b"],
                  params["b_ih_b"], params["b_hh_b"])[:, ::-1, :]
    merged = fwd + bwd
    if not return_seq:
        merged = merged[:, -1, :]
    return merged


if __name__ == "__main__":
    B, T, D = 2, 8, 32          # batch=2, seq=8, rnn_dim=32
    return_seq = True

    key = jax.random.PRNGKey(0)
    x_key, p_key = jax.random.split(key)
    word_embs = jax.random.normal(x_key, (B, T, D), jnp.float32)
    params = make_gru_params(D, p_key)

    out = gru_rnn_module_a(word_embs, params, return_seq=return_seq)
    out = jax.block_until_ready(out)

    ref = gru_rnn_module_a_ref(word_embs, params, return_seq=return_seq)
    assert out.shape == ref.shape == (B, T, D)
    max_err = float(jnp.max(jnp.abs(out - ref)))
    # bf16 weights / bf16 x feed the MXU; accumulation and gate math stay in f32
    assert jnp.allclose(out, ref, rtol=2e-2, atol=2e-2), \
        f"mismatch vs reference (max abs err {max_err})"

    print("KERNEL_OK")
</pallas_src>

<mosaic_0001>
module attributes {stable_mosaic.version = 11 : i64} {
  func.func @bigru_kernel(%arg0: i32, %arg1: memref<8x2x32xbf16, #tpu.memory_space<vmem>>, %arg2: memref<2x32x96xbf16, #tpu.memory_space<vmem>>, %arg3: memref<2x1x96xf32, #tpu.memory_space<vmem>>, %arg4: memref<2x32x96xbf16, #tpu.memory_space<vmem>>, %arg5: memref<2x1x96xf32, #tpu.memory_space<vmem>>, %arg6: memref<8x64xf32, #tpu.memory_space<vmem>>, %arg7: memref<2x8x2x96xf32, #tpu.memory_space<vmem>>, %arg8: memref<8x2x32xf32, #tpu.memory_space<vmem>>, %arg9: memref<8x2x32xf32, #tpu.memory_space<vmem>>) attributes {dimension_semantics = [#tpu.dimension_semantics<parallel>], iteration_bounds = array<i64: 1>, scalar_prefetch = 0 : i64, scratch_operands = 3 : i64, tpu.core_type = #tpu.core_type<tc>, window_params = [{transform_indices = @transform_0, window_bounds = array<i64: 8, 2, 32>}, {pipeline_mode = #tpu.pipeline_mode<synchronous>, transform_indices = @transform_1, window_bounds = array<i64: 2, 32, 96>}, {pipeline_mode = #tpu.pipeline_mode<synchronous>, transform_indices = @transform_2, window_bounds = array<i64: 2, 1, 96>}, {pipeline_mode = #tpu.pipeline_mode<synchronous>, transform_indices = @transform_3, window_bounds = array<i64: 2, 32, 96>}, {pipeline_mode = #tpu.pipeline_mode<synchronous>, transform_indices = @transform_4, window_bounds = array<i64: 2, 1, 96>}, {transform_indices = @transform_5, window_bounds = array<i64: 8, 64>}]} {
    %c0 = arith.constant 0 : index
    %c0_0 = arith.constant 0 : index
    %c0_1 = arith.constant 0 : index
    %0 = vector.load %arg1[%c0, %c0_0, %c0_1] : memref<8x2x32xbf16, #tpu.memory_space<vmem>>, vector<8x2x32xbf16>
    %1 = vector.shape_cast %0 : vector<8x2x32xbf16> to vector<16x32xbf16>
    %c0_2 = arith.constant 0 : index
    %c0_3 = arith.constant 0 : index
    %c0_4 = arith.constant 0 : index
    %2 = vector.load %arg2[%c0_2, %c0_3, %c0_4] : memref<2x32x96xbf16, #tpu.memory_space<vmem>>, vector<1x32x96xbf16>
    %3 = vector.shape_cast %2 : vector<1x32x96xbf16> to vector<32x96xbf16>
    %cst = arith.constant dense<0.000000e+00> : vector<16x96xf32>
    %4 = tpu.matmul %1, %3, %cst {dimension_numbers = #tpu.dot_dimension_numbers<[1], [0], [0], [1], [0, 0, 1, 1], [], []>} : vector<16x32xbf16>, vector<32x96xbf16>, vector<16x96xf32> -> vector<16x96xf32>
    %c0_5 = arith.constant 0 : index
    %c0_6 = arith.constant 0 : index
    %c0_7 = arith.constant 0 : index
    %5 = vector.load %arg3[%c0_5, %c0_6, %c0_7] : memref<2x1x96xf32, #tpu.memory_space<vmem>>, vector<1x1x96xf32>
    %6 = vector.shape_cast %5 : vector<1x1x96xf32> to vector<1x96xf32>
    %7 = vector.broadcast %6 : vector<1x96xf32> to vector<16x96xf32>
    %8 = arith.addf %4, %7 : vector<16x96xf32>
    %9 = vector.shape_cast %8 : vector<16x96xf32> to vector<8x2x96xf32>
    %c0_8 = arith.constant 0 : index
    %c0_9 = arith.constant 0 : index
    %c0_10 = arith.constant 0 : index
    %c0_11 = arith.constant 0 : index
    %10 = vector.load %arg7[%c0_8, %c0_9, %c0_10, %c0_11] : memref<2x8x2x96xf32, #tpu.memory_space<vmem>>, vector<1x8x2x96xf32>
    %11 = vector.shape_cast %10 : vector<1x8x2x96xf32> to vector<8x2x96xf32>
    %12 = vector.shape_cast %9 : vector<8x2x96xf32> to vector<1x8x2x96xf32>
    tpu.vector_store %arg7[%c0_8, %c0_9, %c0_10, %c0_11], %12 {strides = array<i32>} : memref<2x8x2x96xf32, #tpu.memory_space<vmem>>, vector<1x8x2x96xf32>,
    %c1 = arith.constant 1 : index
    %c0_12 = arith.constant 0 : index
    %c0_13 = arith.constant 0 : index
    %13 = vector.load %arg2[%c1, %c0_12, %c0_13] : memref<2x32x96xbf16, #tpu.memory_space<vmem>>, vector<1x32x96xbf16>
    %14 = vector.shape_cast %13 : vector<1x32x96xbf16> to vector<32x96xbf16>
    %cst_14 = arith.constant dense<0.000000e+00> : vector<16x96xf32>
    %15 = tpu.matmul %1, %14, %cst_14 {dimension_numbers = #tpu.dot_dimension_numbers<[1], [0], [0], [1], [0, 0, 1, 1], [], []>} : vector<16x32xbf16>, vector<32x96xbf16>, vector<16x96xf32> -> vector<16x96xf32>
    %c1_15 = arith.constant 1 : index
    %c0_16 = arith.constant 0 : index
    %c0_17 = arith.constant 0 : index
    %16 = vector.load %arg3[%c1_15, %c0_16, %c0_17] : memref<2x1x96xf32, #tpu.memory_space<vmem>>, vector<1x1x96xf32>
    %17 = vector.shape_cast %16 : vector<1x1x96xf32> to vector<1x96xf32>
    %18 = vector.broadcast %17 : vector<1x96xf32> to vector<16x96xf32>
    %19 = arith.addf %15, %18 : vector<16x96xf32>
    %20 = vector.shape_cast %19 : vector<16x96xf32> to vector<8x2x96xf32>
    %c1_18 = arith.constant 1 : index
    %c0_19 = arith.constant 0 : index
    %c0_20 = arith.constant 0 : index
    %c0_21 = arith.constant 0 : index
    %21 = vector.load %arg7[%c1_18, %c0_19, %c0_20, %c0_21] : memref<2x8x2x96xf32, #tpu.memory_space<vmem>>, vector<1x8x2x96xf32>
    %22 = vector.shape_cast %21 : vector<1x8x2x96xf32> to vector<8x2x96xf32>
    %23 = vector.shape_cast %20 : vector<8x2x96xf32> to vector<1x8x2x96xf32>
    tpu.vector_store %arg7[%c1_18, %c0_19, %c0_20, %c0_21], %23 {strides = array<i32>} : memref<2x8x2x96xf32, #tpu.memory_space<vmem>>, vector<1x8x2x96xf32>,
    %cst_22 = arith.constant 0.000000e+00 : f32
    %24 = vector.broadcast %cst_22 : f32 to vector<2x32xf32>
    %25 = arith.truncf %24 : vector<2x32xf32> to vector<2x32xbf16>
    %c0_23 = arith.constant 0 : index
    %c0_24 = arith.constant 0 : index
    %c0_25 = arith.constant 0 : index
    %26 = vector.load %arg4[%c0_23, %c0_24, %c0_25] : memref<2x32x96xbf16, #tpu.memory_space<vmem>>, vector<1x32x96xbf16>
    %27 = vector.shape_cast %26 : vector<1x32x96xbf16> to vector<32x96xbf16>
    %cst_26 = arith.constant dense<0.000000e+00> : vector<2x96xf32>
    %28 = tpu.matmul %25, %27, %cst_26 {dimension_numbers = #tpu.dot_dimension_numbers<[1], [0], [0], [1], [0, 0, 1, 1], [], []>} : vector<2x32xbf16>, vector<32x96xbf16>, vector<2x96xf32> -> vector<2x96xf32>
    %c0_27 = arith.constant 0 : index
    %c0_28 = arith.constant 0 : index
    %c0_29 = arith.constant 0 : index
    %29 = vector.load %arg5[%c0_27, %c0_28, %c0_29] : memref<2x1x96xf32, #tpu.memory_space<vmem>>, vector<1x1x96xf32>
    %30 = vector.shape_cast %29 : vector<1x1x96xf32> to vector<1x96xf32>
    %31 = vector.broadcast %30 : vector<1x96xf32> to vector<2x96xf32>
    %32 = arith.addf %28, %31 : vector<2x96xf32>
    %c0_30 = arith.constant 0 : index
    %c0_31 = arith.constant 0 : index
    %c0_32 = arith.constant 0 : index
    %c0_33 = arith.constant 0 : index
    %33 = vector.load %arg7[%c0_30, %c0_31, %c0_32, %c0_33] : memref<2x8x2x96xf32, #tpu.memory_space<vmem>>, vector<1x1x2x96xf32>
    %34 = vector.shape_cast %33 : vector<1x1x2x96xf32> to vector<2x96xf32>
    %35 = vector.extract_strided_slice %34 {offsets = [0, 0], sizes = [2, 64], strides = [1, 1]} : vector<2x96xf32> to vector<2x64xf32>
    %36 = vector.extract_strided_slice %32 {offsets = [0, 0], sizes = [2, 64], strides = [1, 1]} : vector<2x96xf32> to vector<2x64xf32>
    %37 = arith.addf %35, %36 : vector<2x64xf32>
    %38 = arith.negf %37 : vector<2x64xf32>
    %39 = math.exp %38 : vector<2x64xf32>
    %cst_34 = arith.constant 1.000000e+00 : f32
    %40 = vector.broadcast %cst_34 : f32 to vector<2x64xf32>
    %41 = arith.addf %40, %39 : vector<2x64xf32>
    %42 = arith.divf %40, %41 : vector<2x64xf32>
    %43 = vector.extract_strided_slice %42 {offsets = [0, 0], sizes = [2, 32], strides = [1, 1]} : vector<2x64xf32> to vector<2x32xf32>
    %44 = vector.extract_strided_slice %42 {offsets = [0, 32], sizes = [2, 32], strides = [1, 1]} : vector<2x64xf32> to vector<2x32xf32>
    %45 = vector.extract_strided_slice %34 {offsets = [0, 64], sizes = [2, 32], strides = [1, 1]} : vector<2x96xf32> to vector<2x32xf32>
    %46 = vector.extract_strided_slice %32 {offsets = [0, 64], sizes = [2, 32], strides = [1, 1]} : vector<2x96xf32> to vector<2x32xf32>
    %47 = arith.mulf %43, %46 : vector<2x32xf32>
    %48 = arith.addf %45, %47 : vector<2x32xf32>
    %49 = math.tanh %48 : vector<2x32xf32>
    %cst_35 = arith.constant 1.000000e+00 : f32
    %50 = vector.broadcast %cst_35 : f32 to vector<2x32xf32>
    %51 = arith.subf %50, %44 : vector<2x32xf32>
    %52 = arith.mulf %51, %49 : vector<2x32xf32>
    %53 = arith.mulf %44, %24 : vector<2x32xf32>
    %54 = arith.addf %52, %53 : vector<2x32xf32>
    %55 = arith.truncf %24 : vector<2x32xf32> to vector<2x32xbf16>
    %c1_36 = arith.constant 1 : index
    %c0_37 = arith.constant 0 : index
    %c0_38 = arith.constant 0 : index
    %56 = vector.load %arg4[%c1_36, %c0_37, %c0_38] : memref<2x32x96xbf16, #tpu.memory_space<vmem>>, vector<1x32x96xbf16>
    %57 = vector.shape_cast %56 : vector<1x32x96xbf16> to vector<32x96xbf16>
    %cst_39 = arith.constant dense<0.000000e+00> : vector<2x96xf32>
    %58 = tpu.matmul %55, %57, %cst_39 {dimension_numbers = #tpu.dot_dimension_numbers<[1], [0], [0], [1], [0, 0, 1, 1], [], []>} : vector<2x32xbf16>, vector<32x96xbf16>, vector<2x96xf32> -> vector<2x96xf32>
    %c1_40 = arith.constant 1 : index
    %c0_41 = arith.constant 0 : index
    %c0_42 = arith.constant 0 : index
    %59 = vector.load %arg5[%c1_40, %c0_41, %c0_42] : memref<2x1x96xf32, #tpu.memory_space<vmem>>, vector<1x1x96xf32>
    %60 = vector.shape_cast %59 : vector<1x1x96xf32> to vector<1x96xf32>
    %61 = vector.broadcast %60 : vector<1x96xf32> to vector<2x96xf32>
    %62 = arith.addf %58, %61 : vector<2x96xf32>
    %c1_43 = arith.constant 1 : index
    %c7 = arith.constant 7 : index
    %c0_44 = arith.constant 0 : index
    %c0_45 = arith.constant 0 : index
    %63 = vector.load %arg7[%c1_43, %c7, %c0_44, %c0_45] : memref<2x8x2x96xf32, #tpu.memory_space<vmem>>, vector<1x1x2x96xf32>
    %64 = vector.shape_cast %63 : vector<1x1x2x96xf32> to vector<2x96xf32>
    %65 = vector.extract_strided_slice %64 {offsets = [0, 0], sizes = [2, 64], strides = [1, 1]} : vector<2x96xf32> to vector<2x64xf32>
    %66 = vector.extract_strided_slice %62 {offsets = [0, 0], sizes = [2, 64], strides = [1, 1]} : vector<2x96xf32> to vector<2x64xf32>
    %67 = arith.addf %65, %66 : vector<2x64xf32>
    %68 = arith.negf %67 : vector<2x64xf32>
    %69 = math.exp %68 : vector<2x64xf32>
    %cst_46 = arith.constant 1.000000e+00 : f32
    %70 = vector.broadcast %cst_46 : f32 to vector<2x64xf32>
    %71 = arith.addf %70, %69 : vector<2x64xf32>
    %72 = arith.divf %70, %71 : vector<2x64xf32>
    %73 = vector.extract_strided_slice %72 {offsets = [0, 0], sizes = [2, 32], strides = [1, 1]} : vector<2x64xf32> to vector<2x32xf32>
    %74 = vector.extract_strided_slice %72 {offsets = [0, 32], sizes = [2, 32], strides = [1, 1]} : vector<2x64xf32> to vector<2x32xf32>
    %75 = vector.extract_strided_slice %64 {offsets = [0, 64], sizes = [2, 32], strides = [1, 1]} : vector<2x96xf32> to vector<2x32xf32>
    %76 = vector.extract_strided_slice %62 {offsets = [0, 64], sizes = [2, 32], strides = [1, 1]} : vector<2x96xf32> to vector<2x32xf32>
    %77 = arith.mulf %73, %76 : vector<2x32xf32>
    %78 = arith.addf %75, %77 : vector<2x32xf32>
    %79 = math.tanh %78 : vector<2x32xf32>
    %cst_47 = arith.constant 1.000000e+00 : f32
    %80 = vector.broadcast %cst_47 : f32 to vector<2x32xf32>
    %81 = arith.subf %80, %74 : vector<2x32xf32>
    %82 = arith.mulf %81, %79 : vector<2x32xf32>
    %83 = arith.mulf %74, %24 : vector<2x32xf32>
    %84 = arith.addf %82, %83 : vector<2x32xf32>
    %c0_48 = arith.constant 0 : index
    %c0_49 = arith.constant 0 : index
    %c0_50 = arith.constant 0 : index
    %85 = vector.load %arg8[%c0_48, %c0_49, %c0_50] : memref<8x2x32xf32, #tpu.memory_space<vmem>>, vector<1x2x32xf32>
    %86 = vector.shape_cast %85 : vector<1x2x32xf32> to vector<2x32xf32>
    %87 = vector.shape_cast %54 : vector<2x32xf32> to vector<1x2x32xf32>
    tpu.vector_store %arg8[%c0_48, %c0_49, %c0_50], %87 {strides = array<i32>} : memref<8x2x32xf32, #tpu.memory_space<vmem>>, vector<1x2x32xf32>,
    %c7_51 = arith.constant 7 : index
    %c0_52 = arith.constant 0 : index
    %c0_53 = arith.constant 0 : index
    %88 = vector.load %arg9[%c7_51, %c0_52, %c0_53] : memref<8x2x32xf32, #tpu.memory_space<vmem>>, vector<1x2x32xf32>
    %89 = vector.shape_cast %88 : vector<1x2x32xf32> to vector<2x32xf32>
    %90 = vector.shape_cast %84 : vector<2x32xf32> to vector<1x2x32xf32>
    tpu.vector_store %arg9[%c7_51, %c0_52, %c0_53], %90 {strides = array<i32>} : memref<8x2x32xf32, #tpu.memory_space<vmem>>, vector<1x2x32xf32>,
    %91 = arith.truncf %54 : vector<2x32xf32> to vector<2x32xbf16>
    %c0_54 = arith.constant 0 : index
    %c0_55 = arith.constant 0 : index
    %c0_56 = arith.constant 0 : index
    %92 = vector.load %arg4[%c0_54, %c0_55, %c0_56] : memref<2x32x96xbf16, #tpu.memory_space<vmem>>, vector<1x32x96xbf16>
    %93 = vector.shape_cast %92 : vector<1x32x96xbf16> to vector<32x96xbf16>
    %cst_57 = arith.constant dense<0.000000e+00> : vector<2x96xf32>
    %94 = tpu.matmul %91, %93, %cst_57 {dimension_numbers = #tpu.dot_dimension_numbers<[1], [0], [0], [1], [0, 0, 1, 1], [], []>} : vector<2x32xbf16>, vector<32x96xbf16>, vector<2x96xf32> -> vector<2x96xf32>
    %c0_58 = arith.constant 0 : index
    %c0_59 = arith.constant 0 : index
    %c0_60 = arith.constant 0 : index
    %95 = vector.load %arg5[%c0_58, %c0_59, %c0_60] : memref<2x1x96xf32, #tpu.memory_space<vmem>>, vector<1x1x96xf32>
    %96 = vector.shape_cast %95 : vector<1x1x96xf32> to vector<1x96xf32>
    %97 = vector.broadcast %96 : vector<1x96xf32> to vector<2x96xf32>
    %98 = arith.addf %94, %97 : vector<2x96xf32>
    %c0_61 = arith.constant 0 : index
    %c1_62 = arith.constant 1 : index
    %c0_63 = arith.constant 0 : index
    %c0_64 = arith.constant 0 : index
    %99 = vector.load %arg7[%c0_61, %c1_62, %c0_63, %c0_64] : memref<2x8x2x96xf32, #tpu.memory_space<vmem>>, vector<1x1x2x96xf32>
    %100 = vector.shape_cast %99 : vector<1x1x2x96xf32> to vector<2x96xf32>
    %101 = vector.extract_strided_slice %100 {offsets = [0, 0], sizes = [2, 64], strides = [1, 1]} : vector<2x96xf32> to vector<2x64xf32>
    %102 = vector.extract_strided_slice %98 {offsets = [0, 0], sizes = [2, 64], strides = [1, 1]} : vector<2x96xf32> to vector<2x64xf32>
    %103 = arith.addf %101, %102 : vector<2x64xf32>
    %104 = arith.negf %103 : vector<2x64xf32>
    %105 = math.exp %104 : vector<2x64xf32>
    %cst_65 = arith.constant 1.000000e+00 : f32
    %106 = vector.broadcast %cst_65 : f32 to vector<2x64xf32>
    %107 = arith.addf %106, %105 : vector<2x64xf32>
    %108 = arith.divf %106, %107 : vector<2x64xf32>
    %109 = vector.extract_strided_slice %108 {offsets = [0, 0], sizes = [2, 32], strides = [1, 1]} : vector<2x64xf32> to vector<2x32xf32>
    %110 = vector.extract_strided_slice %108 {offsets = [0, 32], sizes = [2, 32], strides = [1, 1]} : vector<2x64xf32> to vector<2x32xf32>
    %111 = vector.extract_strided_slice %100 {offsets = [0, 64], sizes = [2, 32], strides = [1, 1]} : vector<2x96xf32> to vector<2x32xf32>
    %112 = vector.extract_strided_slice %98 {offsets = [0, 64], sizes = [2, 32], strides = [1, 1]} : vector<2x96xf32> to vector<2x32xf32>
    %113 = arith.mulf %109, %112 : vector<2x32xf32>
    %114 = arith.addf %111, %113 : vector<2x32xf32>
    %115 = math.tanh %114 : vector<2x32xf32>
    %cst_66 = arith.constant 1.000000e+00 : f32
    %116 = vector.broadcast %cst_66 : f32 to vector<2x32xf32>
    %117 = arith.subf %116, %110 : vector<2x32xf32>
    %118 = arith.mulf %117, %115 : vector<2x32xf32>
    %119 = arith.mulf %110, %54 : vector<2x32xf32>
    %120 = arith.addf %118, %119 : vector<2x32xf32>
    %121 = arith.truncf %84 : vector<2x32xf32> to vector<2x32xbf16>
    %c1_67 = arith.constant 1 : index
    %c0_68 = arith.constant 0 : index
    %c0_69 = arith.constant 0 : index
    %122 = vector.load %arg4[%c1_67, %c0_68, %c0_69] : memref<2x32x96xbf16, #tpu.memory_space<vmem>>, vector<1x32x96xbf16>
    %123 = vector.shape_cast %122 : vector<1x32x96xbf16> to vector<32x96xbf16>
    %cst_70 = arith.constant dense<0.000000e+00> : vector<2x96xf32>
    %124 = tpu.matmul %121, %123, %cst_70 {dimension_numbers = #tpu.dot_dimension_numbers<[1], [0], [0], [1], [0, 0, 1, 1], [], []>} : vector<2x32xbf16>, vector<32x96xbf16>, vector<2x96xf32> -> vector<2x96xf32>
    %c1_71 = arith.constant 1 : index
    %c0_72 = arith.constant 0 : index
    %c0_73 = arith.constant 0 : index
    %125 = vector.load %arg5[%c1_71, %c0_72, %c0_73] : memref<2x1x96xf32, #tpu.memory_space<vmem>>, vector<1x1x96xf32>
    %126 = vector.shape_cast %125 : vector<1x1x96xf32> to vector<1x96xf32>
    %127 = vector.broadcast %126 : vector<1x96xf32> to vector<2x96xf32>
    %128 = arith.addf %124, %127 : vector<2x96xf32>
    %c1_74 = arith.constant 1 : index
    %c6 = arith.constant 6 : index
    %c0_75 = arith.constant 0 : index
    %c0_76 = arith.constant 0 : index
    %129 = vector.load %arg7[%c1_74, %c6, %c0_75, %c0_76] : memref<2x8x2x96xf32, #tpu.memory_space<vmem>>, vector<1x1x2x96xf32>
    %130 = vector.shape_cast %129 : vector<1x1x2x96xf32> to vector<2x96xf32>
    %131 = vector.extract_strided_slice %130 {offsets = [0, 0], sizes = [2, 64], strides = [1, 1]} : vector<2x96xf32> to vector<2x64xf32>
    %132 = vector.extract_strided_slice %128 {offsets = [0, 0], sizes = [2, 64], strides = [1, 1]} : vector<2x96xf32> to vector<2x64xf32>
    %133 = arith.addf %131, %132 : vector<2x64xf32>
    %134 = arith.negf %133 : vector<2x64xf32>
    %135 = math.exp %134 : vector<2x64xf32>
    %cst_77 = arith.constant 1.000000e+00 : f32
    %136 = vector.broadcast %cst_77 : f32 to vector<2x64xf32>
    %137 = arith.addf %136, %135 : vector<2x64xf32>
    %138 = arith.divf %136, %137 : vector<2x64xf32>
    %139 = vector.extract_strided_slice %138 {offsets = [0, 0], sizes = [2, 32], strides = [1, 1]} : vector<2x64xf32> to vector<2x32xf32>
    %140 = vector.extract_strided_slice %138 {offsets = [0, 32], sizes = [2, 32], strides = [1, 1]} : vector<2x64xf32> to vector<2x32xf32>
    %141 = vector.extract_strided_slice %130 {offsets = [0, 64], sizes = [2, 32], strides = [1, 1]} : vector<2x96xf32> to vector<2x32xf32>
    %142 = vector.extract_strided_slice %128 {offsets = [0, 64], sizes = [2, 32], strides = [1, 1]} : vector<2x96xf32> to vector<2x32xf32>
    %143 = arith.mulf %139, %142 : vector<2x32xf32>
    %144 = arith.addf %141, %143 : vector<2x32xf32>
    %145 = math.tanh %144 : vector<2x32xf32>
    %cst_78 = arith.constant 1.000000e+00 : f32
    %146 = vector.broadcast %cst_78 : f32 to vector<2x32xf32>
    %147 = arith.subf %146, %140 : vector<2x32xf32>
    %148 = arith.mulf %147, %145 : vector<2x32xf32>
    %149 = arith.mulf %140, %84 : vector<2x32xf32>
    %150 = arith.addf %148, %149 : vector<2x32xf32>
    %c1_79 = arith.constant 1 : index
    %c0_80 = arith.constant 0 : index
    %c0_81 = arith.constant 0 : index
    %151 = vector.load %arg8[%c1_79, %c0_80, %c0_81] : memref<8x2x32xf32, #tpu.memory_space<vmem>>, vector<1x2x32xf32>
    %152 = vector.shape_cast %151 : vector<1x2x32xf32> to vector<2x32xf32>
    %153 = vector.shape_cast %120 : vector<2x32xf32> to vector<1x2x32xf32>
    tpu.vector_store %arg8[%c1_79, %c0_80, %c0_81], %153 {strides = array<i32>} : memref<8x2x32xf32, #tpu.memory_space<vmem>>, vector<1x2x32xf32>,
    %c6_82 = arith.constant 6 : index
    %c0_83 = arith.constant 0 : index
    %c0_84 = arith.constant 0 : index
    %154 = vector.load %arg9[%c6_82, %c0_83, %c0_84] : memref<8x2x32xf32, #tpu.memory_space<vmem>>, vector<1x2x32xf32>
    %155 = vector.shape_cast %154 : vector<1x2x32xf32> to vector<2x32xf32>
    %156 = vector.shape_cast %150 : vector<2x32xf32> to vector<1x2x32xf32>
    tpu.vector_store %arg9[%c6_82, %c0_83, %c0_84], %156 {strides = array<i32>} : memref<8x2x32xf32, #tpu.memory_space<vmem>>, vector<1x2x32xf32>,
    %157 = arith.truncf %120 : vector<2x32xf32> to vector<2x32xbf16>
    %c0_85 = arith.constant 0 : index
    %c0_86 = arith.constant 0 : index
    %c0_87 = arith.constant 0 : index
    %158 = vector.load %arg4[%c0_85, %c0_86, %c0_87] : memref<2x32x96xbf16, #tpu.memory_space<vmem>>, vector<1x32x96xbf16>
    %159 = vector.shape_cast %158 : vector<1x32x96xbf16> to vector<32x96xbf16>
    %cst_88 = arith.constant dense<0.000000e+00> : vector<2x96xf32>
    %160 = tpu.matmul %157, %159, %cst_88 {dimension_numbers = #tpu.dot_dimension_numbers<[1], [0], [0], [1], [0, 0, 1, 1], [], []>} : vector<2x32xbf16>, vector<32x96xbf16>, vector<2x96xf32> -> vector<2x96xf32>
    %c0_89 = arith.constant 0 : index
    %c0_90 = arith.constant 0 : index
    %c0_91 = arith.constant 0 : index
    %161 = vector.load %arg5[%c0_89, %c0_90, %c0_91] : memref<2x1x96xf32, #tpu.memory_space<vmem>>, vector<1x1x96xf32>
    %162 = vector.shape_cast %161 : vector<1x1x96xf32> to vector<1x96xf32>
    %163 = vector.broadcast %162 : vector<1x96xf32> to vector<2x96xf32>
    %164 = arith.addf %160, %163 : vector<2x96xf32>
    %c0_92 = arith.constant 0 : index
    %c2 = arith.constant 2 : index
    %c0_93 = arith.constant 0 : index
    %c0_94 = arith.constant 0 : index
    %165 = vector.load %arg7[%c0_92, %c2, %c0_93, %c0_94] : memref<2x8x2x96xf32, #tpu.memory_space<vmem>>, vector<1x1x2x96xf32>
    %166 = vector.shape_cast %165 : vector<1x1x2x96xf32> to vector<2x96xf32>
    %167 = vector.extract_strided_slice %166 {offsets = [0, 0], sizes = [2, 64], strides = [1, 1]} : vector<2x96xf32> to vector<2x64xf32>
    %168 = vector.extract_strided_slice %164 {offsets = [0, 0], sizes = [2, 64], strides = [1, 1]} : vector<2x96xf32> to vector<2x64xf32>
    %169 = arith.addf %167, %168 : vector<2x64xf32>
    %170 = arith.negf %169 : vector<2x64xf32>
    %171 = math.exp %170 : vector<2x64xf32>
    %cst_95 = arith.constant 1.000000e+00 : f32
    %172 = vector.broadcast %cst_95 : f32 to vector<2x64xf32>
    %173 = arith.addf %172, %171 : vector<2x64xf32>
    %174 = arith.divf %172, %173 : vector<2x64xf32>
    %175 = vector.extract_strided_slice %174 {offsets = [0, 0], sizes = [2, 32], strides = [1, 1]} : vector<2x64xf32> to vector<2x32xf32>
    %176 = vector.extract_strided_slice %174 {offsets = [0, 32], sizes = [2, 32], strides = [1, 1]} : vector<2x64xf32> to vector<2x32xf32>
    %177 = vector.extract_strided_slice %166 {offsets = [0, 64], sizes = [2, 32], strides = [1, 1]} : vector<2x96xf32> to vector<2x32xf32>
    %178 = vector.extract_strided_slice %164 {offsets = [0, 64], sizes = [2, 32], strides = [1, 1]} : vector<2x96xf32> to vector<2x32xf32>
    %179 = arith.mulf %175, %178 : vector<2x32xf32>
    %180 = arith.addf %177, %179 : vector<2x32xf32>
    %181 = math.tanh %180 : vector<2x32xf32>
    %cst_96 = arith.constant 1.000000e+00 : f32
    %182 = vector.broadcast %cst_96 : f32 to vector<2x32xf32>
    %183 = arith.subf %182, %176 : vector<2x32xf32>
    %184 = arith.mulf %183, %181 : vector<2x32xf32>
    %185 = arith.mulf %176, %120 : vector<2x32xf32>
    %186 = arith.addf %184, %185 : vector<2x32xf32>
    %187 = arith.truncf %150 : vector<2x32xf32> to vector<2x32xbf16>
    %c1_97 = arith.constant 1 : index
    %c0_98 = arith.constant 0 : index
    %c0_99 = arith.constant 0 : index
    %188 = vector.load %arg4[%c1_97, %c0_98, %c0_99] : memref<2x32x96xbf16, #tpu.memory_space<vmem>>, vector<1x32x96xbf16>
    %189 = vector.shape_cast %188 : vector<1x32x96xbf16> to vector<32x96xbf16>
    %cst_100 = arith.constant dense<0.000000e+00> : vector<2x96xf32>
    %190 = tpu.matmul %187, %189, %cst_100 {dimension_numbers = #tpu.dot_dimension_numbers<[1], [0], [0], [1], [0, 0, 1, 1], [], []>} : vector<2x32xbf16>, vector<32x96xbf16>, vector<2x96xf32> -> vector<2x96xf32>
    %c1_101 = arith.constant 1 : index
    %c0_102 = arith.constant 0 : index
    %c0_103 = arith.constant 0 : index
    %191 = vector.load %arg5[%c1_101, %c0_102, %c0_103] : memref<2x1x96xf32, #tpu.memory_space<vmem>>, vector<1x1x96xf32>
    %192 = vector.shape_cast %191 : vector<1x1x96xf32> to vector<1x96xf32>
    %193 = vector.broadcast %192 : vector<1x96xf32> to vector<2x96xf32>
    %194 = arith.addf %190, %193 : vector<2x96xf32>
    %c1_104 = arith.constant 1 : index
    %c5 = arith.constant 5 : index
    %c0_105 = arith.constant 0 : index
    %c0_106 = arith.constant 0 : index
    %195 = vector.load %arg7[%c1_104, %c5, %c0_105, %c0_106] : memref<2x8x2x96xf32, #tpu.memory_space<vmem>>, vector<1x1x2x96xf32>
    %196 = vector.shape_cast %195 : vector<1x1x2x96xf32> to vector<2x96xf32>
    %197 = vector.extract_strided_slice %196 {offsets = [0, 0], sizes = [2, 64], strides = [1, 1]} : vector<2x96xf32> to vector<2x64xf32>
    %198 = vector.extract_strided_slice %194 {offsets = [0, 0], sizes = [2, 64], strides = [1, 1]} : vector<2x96xf32> to vector<2x64xf32>
    %199 = arith.addf %197, %198 : vector<2x64xf32>
    %200 = arith.negf %199 : vector<2x64xf32>
    %201 = math.exp %200 : vector<2x64xf32>
    %cst_107 = arith.constant 1.000000e+00 : f32
    %202 = vector.broadcast %cst_107 : f32 to vector<2x64xf32>
    %203 = arith.addf %202, %201 : vector<2x64xf32>
    %204 = arith.divf %202, %203 : vector<2x64xf32>
    %205 = vector.extract_strided_slice %204 {offsets = [0, 0], sizes = [2, 32], strides = [1, 1]} : vector<2x64xf32> to vector<2x32xf32>
    %206 = vector.extract_strided_slice %204 {offsets = [0, 32], sizes = [2, 32], strides = [1, 1]} : vector<2x64xf32> to vector<2x32xf32>
    %207 = vector.extract_strided_slice %196 {offsets = [0, 64], sizes = [2, 32], strides = [1, 1]} : vector<2x96xf32> to vector<2x32xf32>
    %208 = vector.extract_strided_slice %194 {offsets = [0, 64], sizes = [2, 32], strides = [1, 1]} : vector<2x96xf32> to vector<2x32xf32>
    %209 = arith.mulf %205, %208 : vector<2x32xf32>
    %210 = arith.addf %207, %209 : vector<2x32xf32>
    %211 = math.tanh %210 : vector<2x32xf32>
    %cst_108 = arith.constant 1.000000e+00 : f32
    %212 = vector.broadcast %cst_108 : f32 to vector<2x32xf32>
    %213 = arith.subf %212, %206 : vector<2x32xf32>
    %214 = arith.mulf %213, %211 : vector<2x32xf32>
    %215 = arith.mulf %206, %150 : vector<2x32xf32>
    %216 = arith.addf %214, %215 : vector<2x32xf32>
    %c2_109 = arith.constant 2 : index
    %c0_110 = arith.constant 0 : index
    %c0_111 = arith.constant 0 : index
    %217 = vector.load %arg8[%c2_109, %c0_110, %c0_111] : memref<8x2x32xf32, #tpu.memory_space<vmem>>, vector<1x2x32xf32>
    %218 = vector.shape_cast %217 : vector<1x2x32xf32> to vector<2x32xf32>
    %219 = vector.shape_cast %186 : vector<2x32xf32> to vector<1x2x32xf32>
    tpu.vector_store %arg8[%c2_109, %c0_110, %c0_111], %219 {strides = array<i32>} : memref<8x2x32xf32, #tpu.memory_space<vmem>>, vector<1x2x32xf32>,
    %c5_112 = arith.constant 5 : index
    %c0_113 = arith.constant 0 : index
    %c0_114 = arith.constant 0 : index
    %220 = vector.load %arg9[%c5_112, %c0_113, %c0_114] : memref<8x2x32xf32, #tpu.memory_space<vmem>>, vector<1x2x32xf32>
    %221 = vector.shape_cast %220 : vector<1x2x32xf32> to vector<2x32xf32>
    %222 = vector.shape_cast %216 : vector<2x32xf32> to vector<1x2x32xf32>
    tpu.vector_store %arg9[%c5_112, %c0_113, %c0_114], %222 {strides = array<i32>} : memref<8x2x32xf32, #tpu.memory_space<vmem>>, vector<1x2x32xf32>,
    %223 = arith.truncf %186 : vector<2x32xf32> to vector<2x32xbf16>
    %c0_115 = arith.constant 0 : index
    %c0_116 = arith.constant 0 : index
    %c0_117 = arith.constant 0 : index
    %224 = vector.load %arg4[%c0_115, %c0_116, %c0_117] : memref<2x32x96xbf16, #tpu.memory_space<vmem>>, vector<1x32x96xbf16>
    %225 = vector.shape_cast %224 : vector<1x32x96xbf16> to vector<32x96xbf16>
    %cst_118 = arith.constant dense<0.000000e+00> : vector<2x96xf32>
    %226 = tpu.matmul %223, %225, %cst_118 {dimension_numbers = #tpu.dot_dimension_numbers<[1], [0], [0], [1], [0, 0, 1, 1], [], []>} : vector<2x32xbf16>, vector<32x96xbf16>, vector<2x96xf32> -> vector<2x96xf32>
    %c0_119 = arith.constant 0 : index
    %c0_120 = arith.constant 0 : index
    %c0_121 = arith.constant 0 : index
    %227 = vector.load %arg5[%c0_119, %c0_120, %c0_121] : memref<2x1x96xf32, #tpu.memory_space<vmem>>, vector<1x1x96xf32>
    %228 = vector.shape_cast %227 : vector<1x1x96xf32> to vector<1x96xf32>
    %229 = vector.broadcast %228 : vector<1x96xf32> to vector<2x96xf32>
    %230 = arith.addf %226, %229 : vector<2x96xf32>
    %c0_122 = arith.constant 0 : index
    %c3 = arith.constant 3 : index
    %c0_123 = arith.constant 0 : index
    %c0_124 = arith.constant 0 : index
    %231 = vector.load %arg7[%c0_122, %c3, %c0_123, %c0_124] : memref<2x8x2x96xf32, #tpu.memory_space<vmem>>, vector<1x1x2x96xf32>
    %232 = vector.shape_cast %231 : vector<1x1x2x96xf32> to vector<2x96xf32>
    %233 = vector.extract_strided_slice %232 {offsets = [0, 0], sizes = [2, 64], strides = [1, 1]} : vector<2x96xf32> to vector<2x64xf32>
    %234 = vector.extract_strided_slice %230 {offsets = [0, 0], sizes = [2, 64], strides = [1, 1]} : vector<2x96xf32> to vector<2x64xf32>
    %235 = arith.addf %233, %234 : vector<2x64xf32>
    %236 = arith.negf %235 : vector<2x64xf32>
    %237 = math.exp %236 : vector<2x64xf32>
    %cst_125 = arith.constant 1.000000e+00 : f32
    %238 = vector.broadcast %cst_125 : f32 to vector<2x64xf32>
    %239 = arith.addf %238, %237 : vector<2x64xf32>
    %240 = arith.divf %238, %239 : vector<2x64xf32>
    %241 = vector.extract_strided_slice %240 {offsets = [0, 0], sizes = [2, 32], strides = [1, 1]} : vector<2x64xf32> to vector<2x32xf32>
    %242 = vector.extract_strided_slice %240 {offsets = [0, 32], sizes = [2, 32], strides = [1, 1]} : vector<2x64xf32> to vector<2x32xf32>
    %243 = vector.extract_strided_slice %232 {offsets = [0, 64], sizes = [2, 32], strides = [1, 1]} : vector<2x96xf32> to vector<2x32xf32>
    %244 = vector.extract_strided_slice %230 {offsets = [0, 64], sizes = [2, 32], strides = [1, 1]} : vector<2x96xf32> to vector<2x32xf32>
    %245 = arith.mulf %241, %244 : vector<2x32xf32>
    %246 = arith.addf %243, %245 : vector<2x32xf32>
    %247 = math.tanh %246 : vector<2x32xf32>
    %cst_126 = arith.constant 1.000000e+00 : f32
    %248 = vector.broadcast %cst_126 : f32 to vector<2x32xf32>
    %249 = arith.subf %248, %242 : vector<2x32xf32>
    %250 = arith.mulf %249, %247 : vector<2x32xf32>
    %251 = arith.mulf %242, %186 : vector<2x32xf32>
    %252 = arith.addf %250, %251 : vector<2x32xf32>
    %253 = arith.truncf %216 : vector<2x32xf32> to vector<2x32xbf16>
    %c1_127 = arith.constant 1 : index
    %c0_128 = arith.constant 0 : index
    %c0_129 = arith.constant 0 : index
    %254 = vector.load %arg4[%c1_127, %c0_128, %c0_129] : memref<2x32x96xbf16, #tpu.memory_space<vmem>>, vector<1x32x96xbf16>
    %255 = vector.shape_cast %254 : vector<1x32x96xbf16> to vector<32x96xbf16>
    %cst_130 = arith.constant dense<0.000000e+00> : vector<2x96xf32>
    %256 = tpu.matmul %253, %255, %cst_130 {dimension_numbers = #tpu.dot_dimension_numbers<[1], [0], [0], [1], [0, 0, 1, 1], [], []>} : vector<2x32xbf16>, vector<32x96xbf16>, vector<2x96xf32> -> vector<2x96xf32>
    %c1_131 = arith.constant 1 : index
    %c0_132 = arith.constant 0 : index
    %c0_133 = arith.constant 0 : index
    %257 = vector.load %arg5[%c1_131, %c0_132, %c0_133] : memref<2x1x96xf32, #tpu.memory_space<vmem>>, vector<1x1x96xf32>
    %258 = vector.shape_cast %257 : vector<1x1x96xf32> to vector<1x96xf32>
    %259 = vector.broadcast %258 : vector<1x96xf32> to vector<2x96xf32>
    %260 = arith.addf %256, %259 : vector<2x96xf32>
    %c1_134 = arith.constant 1 : index
    %c4 = arith.constant 4 : index
    %c0_135 = arith.constant 0 : index
    %c0_136 = arith.constant 0 : index
    %261 = vector.load %arg7[%c1_134, %c4, %c0_135, %c0_136] : memref<2x8x2x96xf32, #tpu.memory_space<vmem>>, vector<1x1x2x96xf32>
    %262 = vector.shape_cast %261 : vector<1x1x2x96xf32> to vector<2x96xf32>
    %263 = vector.extract_strided_slice %262 {offsets = [0, 0], sizes = [2, 64], strides = [1, 1]} : vector<2x96xf32> to vector<2x64xf32>
    %264 = vector.extract_strided_slice %260 {offsets = [0, 0], sizes = [2, 64], strides = [1, 1]} : vector<2x96xf32> to vector<2x64xf32>
    %265 = arith.addf %263, %264 : vector<2x64xf32>
    %266 = arith.negf %265 : vector<2x64xf32>
    %267 = math.exp %266 : vector<2x64xf32>
    %cst_137 = arith.constant 1.000000e+00 : f32
    %268 = vector.broadcast %cst_137 : f32 to vector<2x64xf32>
    %269 = arith.addf %268, %267 : vector<2x64xf32>
    %270 = arith.divf %268, %269 : vector<2x64xf32>
    %271 = vector.extract_strided_slice %270 {offsets = [0, 0], sizes = [2, 32], strides = [1, 1]} : vector<2x64xf32> to vector<2x32xf32>
    %272 = vector.extract_strided_slice %270 {offsets = [0, 32], sizes = [2, 32], strides = [1, 1]} : vector<2x64xf32> to vector<2x32xf32>
    %273 = vector.extract_strided_slice %262 {offsets = [0, 64], sizes = [2, 32], strides = [1, 1]} : vector<2x96xf32> to vector<2x32xf32>
    %274 = vector.extract_strided_slice %260 {offsets = [0, 64], sizes = [2, 32], strides = [1, 1]} : vector<2x96xf32> to vector<2x32xf32>
    %275 = arith.mulf %271, %274 : vector<2x32xf32>
    %276 = arith.addf %273, %275 : vector<2x32xf32>
    %277 = math.tanh %276 : vector<2x32xf32>
    %cst_138 = arith.constant 1.000000e+00 : f32
    %278 = vector.broadcast %cst_138 : f32 to vector<2x32xf32>
    %279 = arith.subf %278, %272 : vector<2x32xf32>
    %280 = arith.mulf %279, %277 : vector<2x32xf32>
    %281 = arith.mulf %272, %216 : vector<2x32xf32>
    %282 = arith.addf %280, %281 : vector<2x32xf32>
    %c3_139 = arith.constant 3 : index
    %c0_140 = arith.constant 0 : index
    %c0_141 = arith.constant 0 : index
    %283 = vector.load %arg8[%c3_139, %c0_140, %c0_141] : memref<8x2x32xf32, #tpu.memory_space<vmem>>, vector<1x2x32xf32>
    %284 = vector.shape_cast %283 : vector<1x2x32xf32> to vector<2x32xf32>
    %285 = vector.shape_cast %252 : vector<2x32xf32> to vector<1x2x32xf32>
    tpu.vector_store %arg8[%c3_139, %c0_140, %c0_141], %285 {strides = array<i32>} : memref<8x2x32xf32, #tpu.memory_space<vmem>>, vector<1x2x32xf32>,
    %c4_142 = arith.constant 4 : index
    %c0_143 = arith.constant 0 : index
    %c0_144 = arith.constant 0 : index
    %286 = vector.load %arg9[%c4_142, %c0_143, %c0_144] : memref<8x2x32xf32, #tpu.memory_space<vmem>>, vector<1x2x32xf32>
    %287 = vector.shape_cast %286 : vector<1x2x32xf32> to vector<2x32xf32>
    %288 = vector.shape_cast %282 : vector<2x32xf32> to vector<1x2x32xf32>
    tpu.vector_store %arg9[%c4_142, %c0_143, %c0_144], %288 {strides = array<i32>} : memref<8x2x32xf32, #tpu.memory_space<vmem>>, vector<1x2x32xf32>,
    %289 = arith.truncf %252 : vector<2x32xf32> to vector<2x32xbf16>
    %c0_145 = arith.constant 0 : index
    %c0_146 = arith.constant 0 : index
    %c0_147 = arith.constant 0 : index
    %290 = vector.load %arg4[%c0_145, %c0_146, %c0_147] : memref<2x32x96xbf16, #tpu.memory_space<vmem>>, vector<1x32x96xbf16>
    %291 = vector.shape_cast %290 : vector<1x32x96xbf16> to vector<32x96xbf16>
    %cst_148 = arith.constant dense<0.000000e+00> : vector<2x96xf32>
    %292 = tpu.matmul %289, %291, %cst_148 {dimension_numbers = #tpu.dot_dimension_numbers<[1], [0], [0], [1], [0, 0, 1, 1], [], []>} : vector<2x32xbf16>, vector<32x96xbf16>, vector<2x96xf32> -> vector<2x96xf32>
    %c0_149 = arith.constant 0 : index
    %c0_150 = arith.constant 0 : index
    %c0_151 = arith.constant 0 : index
    %293 = vector.load %arg5[%c0_149, %c0_150, %c0_151] : memref<2x1x96xf32, #tpu.memory_space<vmem>>, vector<1x1x96xf32>
    %294 = vector.shape_cast %293 : vector<1x1x96xf32> to vector<1x96xf32>
    %295 = vector.broadcast %294 : vector<1x96xf32> to vector<2x96xf32>
    %296 = arith.addf %292, %295 : vector<2x96xf32>
    %c0_152 = arith.constant 0 : index
    %c4_153 = arith.constant 4 : index
    %c0_154 = arith.constant 0 : index
    %c0_155 = arith.constant 0 : index
    %297 = vector.load %arg7[%c0_152, %c4_153, %c0_154, %c0_155] : memref<2x8x2x96xf32, #tpu.memory_space<vmem>>, vector<1x1x2x96xf32>
    %298 = vector.shape_cast %297 : vector<1x1x2x96xf32> to vector<2x96xf32>
    %299 = vector.extract_strided_slice %298 {offsets = [0, 0], sizes = [2, 64], strides = [1, 1]} : vector<2x96xf32> to vector<2x64xf32>
    %300 = vector.extract_strided_slice %296 {offsets = [0, 0], sizes = [2, 64], strides = [1, 1]} : vector<2x96xf32> to vector<2x64xf32>
    %301 = arith.addf %299, %300 : vector<2x64xf32>
    %302 = arith.negf %301 : vector<2x64xf32>
    %303 = math.exp %302 : vector<2x64xf32>
    %cst_156 = arith.constant 1.000000e+00 : f32
    %304 = vector.broadcast %cst_156 : f32 to vector<2x64xf32>
    %305 = arith.addf %304, %303 : vector<2x64xf32>
    %306 = arith.divf %304, %305 : vector<2x64xf32>
    %307 = vector.extract_strided_slice %306 {offsets = [0, 0], sizes = [2, 32], strides = [1, 1]} : vector<2x64xf32> to vector<2x32xf32>
    %308 = vector.extract_strided_slice %306 {offsets = [0, 32], sizes = [2, 32], strides = [1, 1]} : vector<2x64xf32> to vector<2x32xf32>
    %309 = vector.extract_strided_slice %298 {offsets = [0, 64], sizes = [2, 32], strides = [1, 1]} : vector<2x96xf32> to vector<2x32xf32>
    %310 = vector.extract_strided_slice %296 {offsets = [0, 64], sizes = [2, 32], strides = [1, 1]} : vector<2x96xf32> to vector<2x32xf32>
    %311 = arith.mulf %307, %310 : vector<2x32xf32>
    %312 = arith.addf %309, %311 : vector<2x32xf32>
    %313 = math.tanh %312 : vector<2x32xf32>
    %cst_157 = arith.constant 1.000000e+00 : f32
    %314 = vector.broadcast %cst_157 : f32 to vector<2x32xf32>
    %315 = arith.subf %314, %308 : vector<2x32xf32>
    %316 = arith.mulf %315, %313 : vector<2x32xf32>
    %317 = arith.mulf %308, %252 : vector<2x32xf32>
    %318 = arith.addf %316, %317 : vector<2x32xf32>
    %319 = arith.truncf %282 : vector<2x32xf32> to vector<2x32xbf16>
    %c1_158 = arith.constant 1 : index
    %c0_159 = arith.constant 0 : index
    %c0_160 = arith.constant 0 : index
    %320 = vector.load %arg4[%c1_158, %c0_159, %c0_160] : memref<2x32x96xbf16, #tpu.memory_space<vmem>>, vector<1x32x96xbf16>
    %321 = vector.shape_cast %320 : vector<1x32x96xbf16> to vector<32x96xbf16>
    %cst_161 = arith.constant dense<0.000000e+00> : vector<2x96xf32>
    %322 = tpu.matmul %319, %321, %cst_161 {dimension_numbers = #tpu.dot_dimension_numbers<[1], [0], [0], [1], [0, 0, 1, 1], [], []>} : vector<2x32xbf16>, vector<32x96xbf16>, vector<2x96xf32> -> vector<2x96xf32>
    %c1_162 = arith.constant 1 : index
    %c0_163 = arith.constant 0 : index
    %c0_164 = arith.constant 0 : index
    %323 = vector.load %arg5[%c1_162, %c0_163, %c0_164] : memref<2x1x96xf32, #tpu.memory_space<vmem>>, vector<1x1x96xf32>
    %324 = vector.shape_cast %323 : vector<1x1x96xf32> to vector<1x96xf32>
    %325 = vector.broadcast %324 : vector<1x96xf32> to vector<2x96xf32>
    %326 = arith.addf %322, %325 : vector<2x96xf32>
    %c1_165 = arith.constant 1 : index
    %c3_166 = arith.constant 3 : index
    %c0_167 = arith.constant 0 : index
    %c0_168 = arith.constant 0 : index
    %327 = vector.load %arg7[%c1_165, %c3_166, %c0_167, %c0_168] : memref<2x8x2x96xf32, #tpu.memory_space<vmem>>, vector<1x1x2x96xf32>
    %328 = vector.shape_cast %327 : vector<1x1x2x96xf32> to vector<2x96xf32>
    %329 = vector.extract_strided_slice %328 {offsets = [0, 0], sizes = [2, 64], strides = [1, 1]} : vector<2x96xf32> to vector<2x64xf32>
    %330 = vector.extract_strided_slice %326 {offsets = [0, 0], sizes = [2, 64], strides = [1, 1]} : vector<2x96xf32> to vector<2x64xf32>
    %331 = arith.addf %329, %330 : vector<2x64xf32>
    %332 = arith.negf %331 : vector<2x64xf32>
    %333 = math.exp %332 : vector<2x64xf32>
    %cst_169 = arith.constant 1.000000e+00 : f32
    %334 = vector.broadcast %cst_169 : f32 to vector<2x64xf32>
    %335 = arith.addf %334, %333 : vector<2x64xf32>
    %336 = arith.divf %334, %335 : vector<2x64xf32>
    %337 = vector.extract_strided_slice %336 {offsets = [0, 0], sizes = [2, 32], strides = [1, 1]} : vector<2x64xf32> to vector<2x32xf32>
    %338 = vector.extract_strided_slice %336 {offsets = [0, 32], sizes = [2, 32], strides = [1, 1]} : vector<2x64xf32> to vector<2x32xf32>
    %339 = vector.extract_strided_slice %328 {offsets = [0, 64], sizes = [2, 32], strides = [1, 1]} : vector<2x96xf32> to vector<2x32xf32>
    %340 = vector.extract_strided_slice %326 {offsets = [0, 64], sizes = [2, 32], strides = [1, 1]} : vector<2x96xf32> to vector<2x32xf32>
    %341 = arith.mulf %337, %340 : vector<2x32xf32>
    %342 = arith.addf %339, %341 : vector<2x32xf32>
    %343 = math.tanh %342 : vector<2x32xf32>
    %cst_170 = arith.constant 1.000000e+00 : f32
    %344 = vector.broadcast %cst_170 : f32 to vector<2x32xf32>
    %345 = arith.subf %344, %338 : vector<2x32xf32>
    %346 = arith.mulf %345, %343 : vector<2x32xf32>
    %347 = arith.mulf %338, %282 : vector<2x32xf32>
    %348 = arith.addf %346, %347 : vector<2x32xf32>
    %c4_171 = arith.constant 4 : index
    %c0_172 = arith.constant 0 : index
    %c0_173 = arith.constant 0 : index
    %349 = vector.load %arg8[%c4_171, %c0_172, %c0_173] : memref<8x2x32xf32, #tpu.memory_space<vmem>>, vector<1x2x32xf32>
    %350 = vector.shape_cast %349 : vector<1x2x32xf32> to vector<2x32xf32>
    %351 = vector.shape_cast %318 : vector<2x32xf32> to vector<1x2x32xf32>
    tpu.vector_store %arg8[%c4_171, %c0_172, %c0_173], %351 {strides = array<i32>} : memref<8x2x32xf32, #tpu.memory_space<vmem>>, vector<1x2x32xf32>,
    %c3_174 = arith.constant 3 : index
    %c0_175 = arith.constant 0 : index
    %c0_176 = arith.constant 0 : index
    %352 = vector.load %arg9[%c3_174, %c0_175, %c0_176] : memref<8x2x32xf32, #tpu.memory_space<vmem>>, vector<1x2x32xf32>
    %353 = vector.shape_cast %352 : vector<1x2x32xf32> to vector<2x32xf32>
    %354 = vector.shape_cast %348 : vector<2x32xf32> to vector<1x2x32xf32>
    tpu.vector_store %arg9[%c3_174, %c0_175, %c0_176], %354 {strides = array<i32>} : memref<8x2x32xf32, #tpu.memory_space<vmem>>, vector<1x2x32xf32>,
    %355 = arith.truncf %318 : vector<2x32xf32> to vector<2x32xbf16>
    %c0_177 = arith.constant 0 : index
    %c0_178 = arith.constant 0 : index
    %c0_179 = arith.constant 0 : index
    %356 = vector.load %arg4[%c0_177, %c0_178, %c0_179] : memref<2x32x96xbf16, #tpu.memory_space<vmem>>, vector<1x32x96xbf16>
    %357 = vector.shape_cast %356 : vector<1x32x96xbf16> to vector<32x96xbf16>
    %cst_180 = arith.constant dense<0.000000e+00> : vector<2x96xf32>
    %358 = tpu.matmul %355, %357, %cst_180 {dimension_numbers = #tpu.dot_dimension_numbers<[1], [0], [0], [1], [0, 0, 1, 1], [], []>} : vector<2x32xbf16>, vector<32x96xbf16>, vector<2x96xf32> -> vector<2x96xf32>
    %c0_181 = arith.constant 0 : index
    %c0_182 = arith.constant 0 : index
    %c0_183 = arith.constant 0 : index
    %359 = vector.load %arg5[%c0_181, %c0_182, %c0_183] : memref<2x1x96xf32, #tpu.memory_space<vmem>>, vector<1x1x96xf32>
    %360 = vector.shape_cast %359 : vector<1x1x96xf32> to vector<1x96xf32>
    %361 = vector.broadcast %360 : vector<1x96xf32> to vector<2x96xf32>
    %362 = arith.addf %358, %361 : vector<2x96xf32>
    %c0_184 = arith.constant 0 : index
    %c5_185 = arith.constant 5 : index
    %c0_186 = arith.constant 0 : index
    %c0_187 = arith.constant 0 : index
    %363 = vector.load %arg7[%c0_184, %c5_185, %c0_186, %c0_187] : memref<2x8x2x96xf32, #tpu.memory_space<vmem>>, vector<1x1x2x96xf32>
    %364 = vector.shape_cast %363 : vector<1x1x2x96xf32> to vector<2x96xf32>
    %365 = vector.extract_strided_slice %364 {offsets = [0, 0], sizes = [2, 64], strides = [1, 1]} : vector<2x96xf32> to vector<2x64xf32>
    %366 = vector.extract_strided_slice %362 {offsets = [0, 0], sizes = [2, 64], strides = [1, 1]} : vector<2x96xf32> to vector<2x64xf32>
    %367 = arith.addf %365, %366 : vector<2x64xf32>
    %368 = arith.negf %367 : vector<2x64xf32>
    %369 = math.exp %368 : vector<2x64xf32>
    %cst_188 = arith.constant 1.000000e+00 : f32
    %370 = vector.broadcast %cst_188 : f32 to vector<2x64xf32>
    %371 = arith.addf %370, %369 : vector<2x64xf32>
    %372 = arith.divf %370, %371 : vector<2x64xf32>
    %373 = vector.extract_strided_slice %372 {offsets = [0, 0], sizes = [2, 32], strides = [1, 1]} : vector<2x64xf32> to vector<2x32xf32>
    %374 = vector.extract_strided_slice %372 {offsets = [0, 32], sizes = [2, 32], strides = [1, 1]} : vector<2x64xf32> to vector<2x32xf32>
    %375 = vector.extract_strided_slice %364 {offsets = [0, 64], sizes = [2, 32], strides = [1, 1]} : vector<2x96xf32> to vector<2x32xf32>
    %376 = vector.extract_strided_slice %362 {offsets = [0, 64], sizes = [2, 32], strides = [1, 1]} : vector<2x96xf32> to vector<2x32xf32>
    %377 = arith.mulf %373, %376 : vector<2x32xf32>
    %378 = arith.addf %375, %377 : vector<2x32xf32>
    %379 = math.tanh %378 : vector<2x32xf32>
    %cst_189 = arith.constant 1.000000e+00 : f32
    %380 = vector.broadcast %cst_189 : f32 to vector<2x32xf32>
    %381 = arith.subf %380, %374 : vector<2x32xf32>
    %382 = arith.mulf %381, %379 : vector<2x32xf32>
    %383 = arith.mulf %374, %318 : vector<2x32xf32>
    %384 = arith.addf %382, %383 : vector<2x32xf32>
    %385 = arith.truncf %348 : vector<2x32xf32> to vector<2x32xbf16>
    %c1_190 = arith.constant 1 : index
    %c0_191 = arith.constant 0 : index
    %c0_192 = arith.constant 0 : index
    %386 = vector.load %arg4[%c1_190, %c0_191, %c0_192] : memref<2x32x96xbf16, #tpu.memory_space<vmem>>, vector<1x32x96xbf16>
    %387 = vector.shape_cast %386 : vector<1x32x96xbf16> to vector<32x96xbf16>
    %cst_193 = arith.constant dense<0.000000e+00> : vector<2x96xf32>
    %388 = tpu.matmul %385, %387, %cst_193 {dimension_numbers = #tpu.dot_dimension_numbers<[1], [0], [0], [1], [0, 0, 1, 1], [], []>} : vector<2x32xbf16>, vector<32x96xbf16>, vector<2x96xf32> -> vector<2x96xf32>
    %c1_194 = arith.constant 1 : index
    %c0_195 = arith.constant 0 : index
    %c0_196 = arith.constant 0 : index
    %389 = vector.load %arg5[%c1_194, %c0_195, %c0_196] : memref<2x1x96xf32, #tpu.memory_space<vmem>>, vector<1x1x96xf32>
    %390 = vector.shape_cast %389 : vector<1x1x96xf32> to vector<1x96xf32>
    %391 = vector.broadcast %390 : vector<1x96xf32> to vector<2x96xf32>
    %392 = arith.addf %388, %391 : vector<2x96xf32>
    %c1_197 = arith.constant 1 : index
    %c2_198 = arith.constant 2 : index
    %c0_199 = arith.constant 0 : index
    %c0_200 = arith.constant 0 : index
    %393 = vector.load %arg7[%c1_197, %c2_198, %c0_199, %c0_200] : memref<2x8x2x96xf32, #tpu.memory_space<vmem>>, vector<1x1x2x96xf32>
    %394 = vector.shape_cast %393 : vector<1x1x2x96xf32> to vector<2x96xf32>
    %395 = vector.extract_strided_slice %394 {offsets = [0, 0], sizes = [2, 64], strides = [1, 1]} : vector<2x96xf32> to vector<2x64xf32>
    %396 = vector.extract_strided_slice %392 {offsets = [0, 0], sizes = [2, 64], strides = [1, 1]} : vector<2x96xf32> to vector<2x64xf32>
    %397 = arith.addf %395, %396 : vector<2x64xf32>
    %398 = arith.negf %397 : vector<2x64xf32>
    %399 = math.exp %398 : vector<2x64xf32>
    %cst_201 = arith.constant 1.000000e+00 : f32
    %400 = vector.broadcast %cst_201 : f32 to vector<2x64xf32>
    %401 = arith.addf %400, %399 : vector<2x64xf32>
    %402 = arith.divf %400, %401 : vector<2x64xf32>
    %403 = vector.extract_strided_slice %402 {offsets = [0, 0], sizes = [2, 32], strides = [1, 1]} : vector<2x64xf32> to vector<2x32xf32>
    %404 = vector.extract_strided_slice %402 {offsets = [0, 32], sizes = [2, 32], strides = [1, 1]} : vector<2x64xf32> to vector<2x32xf32>
    %405 = vector.extract_strided_slice %394 {offsets = [0, 64], sizes = [2, 32], strides = [1, 1]} : vector<2x96xf32> to vector<2x32xf32>
    %406 = vector.extract_strided_slice %392 {offsets = [0, 64], sizes = [2, 32], strides = [1, 1]} : vector<2x96xf32> to vector<2x32xf32>
    %407 = arith.mulf %403, %406 : vector<2x32xf32>
    %408 = arith.addf %405, %407 : vector<2x32xf32>
    %409 = math.tanh %408 : vector<2x32xf32>
    %cst_202 = arith.constant 1.000000e+00 : f32
    %410 = vector.broadcast %cst_202 : f32 to vector<2x32xf32>
    %411 = arith.subf %410, %404 : vector<2x32xf32>
    %412 = arith.mulf %411, %409 : vector<2x32xf32>
    %413 = arith.mulf %404, %348 : vector<2x32xf32>
    %414 = arith.addf %412, %413 : vector<2x32xf32>
    %c5_203 = arith.constant 5 : index
    %c0_204 = arith.constant 0 : index
    %c0_205 = arith.constant 0 : index
    %415 = vector.load %arg8[%c5_203, %c0_204, %c0_205] : memref<8x2x32xf32, #tpu.memory_space<vmem>>, vector<1x2x32xf32>
    %416 = vector.shape_cast %415 : vector<1x2x32xf32> to vector<2x32xf32>
    %417 = vector.shape_cast %384 : vector<2x32xf32> to vector<1x2x32xf32>
    tpu.vector_store %arg8[%c5_203, %c0_204, %c0_205], %417 {strides = array<i32>} : memref<8x2x32xf32, #tpu.memory_space<vmem>>, vector<1x2x32xf32>,
    %c2_206 = arith.constant 2 : index
    %c0_207 = arith.constant 0 : index
    %c0_208 = arith.constant 0 : index
    %418 = vector.load %arg9[%c2_206, %c0_207, %c0_208] : memref<8x2x32xf32, #tpu.memory_space<vmem>>, vector<1x2x32xf32>
    %419 = vector.shape_cast %418 : vector<1x2x32xf32> to vector<2x32xf32>
    %420 = vector.shape_cast %414 : vector<2x32xf32> to vector<1x2x32xf32>
    tpu.vector_store %arg9[%c2_206, %c0_207, %c0_208], %420 {strides = array<i32>} : memref<8x2x32xf32, #tpu.memory_space<vmem>>, vector<1x2x32xf32>,
    %421 = arith.truncf %384 : vector<2x32xf32> to vector<2x32xbf16>
    %c0_209 = arith.constant 0 : index
    %c0_210 = arith.constant 0 : index
    %c0_211 = arith.constant 0 : index
    %422 = vector.load %arg4[%c0_209, %c0_210, %c0_211] : memref<2x32x96xbf16, #tpu.memory_space<vmem>>, vector<1x32x96xbf16>
    %423 = vector.shape_cast %422 : vector<1x32x96xbf16> to vector<32x96xbf16>
    %cst_212 = arith.constant dense<0.000000e+00> : vector<2x96xf32>
    %424 = tpu.matmul %421, %423, %cst_212 {dimension_numbers = #tpu.dot_dimension_numbers<[1], [0], [0], [1], [0, 0, 1, 1], [], []>} : vector<2x32xbf16>, vector<32x96xbf16>, vector<2x96xf32> -> vector<2x96xf32>
    %c0_213 = arith.constant 0 : index
    %c0_214 = arith.constant 0 : index
    %c0_215 = arith.constant 0 : index
    %425 = vector.load %arg5[%c0_213, %c0_214, %c0_215] : memref<2x1x96xf32, #tpu.memory_space<vmem>>, vector<1x1x96xf32>
    %426 = vector.shape_cast %425 : vector<1x1x96xf32> to vector<1x96xf32>
    %427 = vector.broadcast %426 : vector<1x96xf32> to vector<2x96xf32>
    %428 = arith.addf %424, %427 : vector<2x96xf32>
    %c0_216 = arith.constant 0 : index
    %c6_217 = arith.constant 6 : index
    %c0_218 = arith.constant 0 : index
    %c0_219 = arith.constant 0 : index
    %429 = vector.load %arg7[%c0_216, %c6_217, %c0_218, %c0_219] : memref<2x8x2x96xf32, #tpu.memory_space<vmem>>, vector<1x1x2x96xf32>
    %430 = vector.shape_cast %429 : vector<1x1x2x96xf32> to vector<2x96xf32>
    %431 = vector.extract_strided_slice %430 {offsets = [0, 0], sizes = [2, 64], strides = [1, 1]} : vector<2x96xf32> to vector<2x64xf32>
    %432 = vector.extract_strided_slice %428 {offsets = [0, 0], sizes = [2, 64], strides = [1, 1]} : vector<2x96xf32> to vector<2x64xf32>
    %433 = arith.addf %431, %432 : vector<2x64xf32>
    %434 = arith.negf %433 : vector<2x64xf32>
    %435 = math.exp %434 : vector<2x64xf32>
    %cst_220 = arith.constant 1.000000e+00 : f32
    %436 = vector.broadcast %cst_220 : f32 to vector<2x64xf32>
    %437 = arith.addf %436, %435 : vector<2x64xf32>
    %438 = arith.divf %436, %437 : vector<2x64xf32>
    %439 = vector.extract_strided_slice %438 {offsets = [0, 0], sizes = [2, 32], strides = [1, 1]} : vector<2x64xf32> to vector<2x32xf32>
    %440 = vector.extract_strided_slice %438 {offsets = [0, 32], sizes = [2, 32], strides = [1, 1]} : vector<2x64xf32> to vector<2x32xf32>
    %441 = vector.extract_strided_slice %430 {offsets = [0, 64], sizes = [2, 32], strides = [1, 1]} : vector<2x96xf32> to vector<2x32xf32>
    %442 = vector.extract_strided_slice %428 {offsets = [0, 64], sizes = [2, 32], strides = [1, 1]} : vector<2x96xf32> to vector<2x32xf32>
    %443 = arith.mulf %439, %442 : vector<2x32xf32>
    %444 = arith.addf %441, %443 : vector<2x32xf32>
    %445 = math.tanh %444 : vector<2x32xf32>
    %cst_221 = arith.constant 1.000000e+00 : f32
    %446 = vector.broadcast %cst_221 : f32 to vector<2x32xf32>
    %447 = arith.subf %446, %440 : vector<2x32xf32>
    %448 = arith.mulf %447, %445 : vector<2x32xf32>
    %449 = arith.mulf %440, %384 : vector<2x32xf32>
    %450 = arith.addf %448, %449 : vector<2x32xf32>
    %451 = arith.truncf %414 : vector<2x32xf32> to vector<2x32xbf16>
    %c1_222 = arith.constant 1 : index
    %c0_223 = arith.constant 0 : index
    %c0_224 = arith.constant 0 : index
    %452 = vector.load %arg4[%c1_222, %c0_223, %c0_224] : memref<2x32x96xbf16, #tpu.memory_space<vmem>>, vector<1x32x96xbf16>
    %453 = vector.shape_cast %452 : vector<1x32x96xbf16> to vector<32x96xbf16>
    %cst_225 = arith.constant dense<0.000000e+00> : vector<2x96xf32>
    %454 = tpu.matmul %451, %453, %cst_225 {dimension_numbers = #tpu.dot_dimension_numbers<[1], [0], [0], [1], [0, 0, 1, 1], [], []>} : vector<2x32xbf16>, vector<32x96xbf16>, vector<2x96xf32> -> vector<2x96xf32>
    %c1_226 = arith.constant 1 : index
    %c0_227 = arith.constant 0 : index
    %c0_228 = arith.constant 0 : index
    %455 = vector.load %arg5[%c1_226, %c0_227, %c0_228] : memref<2x1x96xf32, #tpu.memory_space<vmem>>, vector<1x1x96xf32>
    %456 = vector.shape_cast %455 : vector<1x1x96xf32> to vector<1x96xf32>
    %457 = vector.broadcast %456 : vector<1x96xf32> to vector<2x96xf32>
    %458 = arith.addf %454, %457 : vector<2x96xf32>
    %c1_229 = arith.constant 1 : index
    %c1_230 = arith.constant 1 : index
    %c0_231 = arith.constant 0 : index
    %c0_232 = arith.constant 0 : index
    %459 = vector.load %arg7[%c1_229, %c1_230, %c0_231, %c0_232] : memref<2x8x2x96xf32, #tpu.memory_space<vmem>>, vector<1x1x2x96xf32>
    %460 = vector.shape_cast %459 : vector<1x1x2x96xf32> to vector<2x96xf32>
    %461 = vector.extract_strided_slice %460 {offsets = [0, 0], sizes = [2, 64], strides = [1, 1]} : vector<2x96xf32> to vector<2x64xf32>
    %462 = vector.extract_strided_slice %458 {offsets = [0, 0], sizes = [2, 64], strides = [1, 1]} : vector<2x96xf32> to vector<2x64xf32>
    %463 = arith.addf %461, %462 : vector<2x64xf32>
    %464 = arith.negf %463 : vector<2x64xf32>
    %465 = math.exp %464 : vector<2x64xf32>
    %cst_233 = arith.constant 1.000000e+00 : f32
    %466 = vector.broadcast %cst_233 : f32 to vector<2x64xf32>
    %467 = arith.addf %466, %465 : vector<2x64xf32>
    %468 = arith.divf %466, %467 : vector<2x64xf32>
    %469 = vector.extract_strided_slice %468 {offsets = [0, 0], sizes = [2, 32], strides = [1, 1]} : vector<2x64xf32> to vector<2x32xf32>
    %470 = vector.extract_strided_slice %468 {offsets = [0, 32], sizes = [2, 32], strides = [1, 1]} : vector<2x64xf32> to vector<2x32xf32>
    %471 = vector.extract_strided_slice %460 {offsets = [0, 64], sizes = [2, 32], strides = [1, 1]} : vector<2x96xf32> to vector<2x32xf32>
    %472 = vector.extract_strided_slice %458 {offsets = [0, 64], sizes = [2, 32], strides = [1, 1]} : vector<2x96xf32> to vector<2x32xf32>
    %473 = arith.mulf %469, %472 : vector<2x32xf32>
    %474 = arith.addf %471, %473 : vector<2x32xf32>
    %475 = math.tanh %474 : vector<2x32xf32>
    %cst_234 = arith.constant 1.000000e+00 : f32
    %476 = vector.broadcast %cst_234 : f32 to vector<2x32xf32>
    %477 = arith.subf %476, %470 : vector<2x32xf32>
    %478 = arith.mulf %477, %475 : vector<2x32xf32>
    %479 = arith.mulf %470, %414 : vector<2x32xf32>
    %480 = arith.addf %478, %479 : vector<2x32xf32>
    %c6_235 = arith.constant 6 : index
    %c0_236 = arith.constant 0 : index
    %c0_237 = arith.constant 0 : index
    %481 = vector.load %arg8[%c6_235, %c0_236, %c0_237] : memref<8x2x32xf32, #tpu.memory_space<vmem>>, vector<1x2x32xf32>
    %482 = vector.shape_cast %481 : vector<1x2x32xf32> to vector<2x32xf32>
    %483 = vector.shape_cast %450 : vector<2x32xf32> to vector<1x2x32xf32>
    tpu.vector_store %arg8[%c6_235, %c0_236, %c0_237], %483 {strides = array<i32>} : memref<8x2x32xf32, #tpu.memory_space<vmem>>, vector<1x2x32xf32>,
    %c1_238 = arith.constant 1 : index
    %c0_239 = arith.constant 0 : index
    %c0_240 = arith.constant 0 : index
    %484 = vector.load %arg9[%c1_238, %c0_239, %c0_240] : memref<8x2x32xf32, #tpu.memory_space<vmem>>, vector<1x2x32xf32>
    %485 = vector.shape_cast %484 : vector<1x2x32xf32> to vector<2x32xf32>
    %486 = vector.shape_cast %480 : vector<2x32xf32> to vector<1x2x32xf32>
    tpu.vector_store %arg9[%c1_238, %c0_239, %c0_240], %486 {strides = array<i32>} : memref<8x2x32xf32, #tpu.memory_space<vmem>>, vector<1x2x32xf32>,
    %487 = arith.truncf %450 : vector<2x32xf32> to vector<2x32xbf16>
    %c0_241 = arith.constant 0 : index
    %c0_242 = arith.constant 0 : index
    %c0_243 = arith.constant 0 : index
    %488 = vector.load %arg4[%c0_241, %c0_242, %c0_243] : memref<2x32x96xbf16, #tpu.memory_space<vmem>>, vector<1x32x96xbf16>
    %489 = vector.shape_cast %488 : vector<1x32x96xbf16> to vector<32x96xbf16>
    %cst_244 = arith.constant dense<0.000000e+00> : vector<2x96xf32>
    %490 = tpu.matmul %487, %489, %cst_244 {dimension_numbers = #tpu.dot_dimension_numbers<[1], [0], [0], [1], [0, 0, 1, 1], [], []>} : vector<2x32xbf16>, vector<32x96xbf16>, vector<2x96xf32> -> vector<2x96xf32>
    %c0_245 = arith.constant 0 : index
    %c0_246 = arith.constant 0 : index
    %c0_247 = arith.constant 0 : index
    %491 = vector.load %arg5[%c0_245, %c0_246, %c0_247] : memref<2x1x96xf32, #tpu.memory_space<vmem>>, vector<1x1x96xf32>
    %492 = vector.shape_cast %491 : vector<1x1x96xf32> to vector<1x96xf32>
    %493 = vector.broadcast %492 : vector<1x96xf32> to vector<2x96xf32>
    %494 = arith.addf %490, %493 : vector<2x96xf32>
    %c0_248 = arith.constant 0 : index
    %c7_249 = arith.constant 7 : index
    %c0_250 = arith.constant 0 : index
    %c0_251 = arith.constant 0 : index
    %495 = vector.load %arg7[%c0_248, %c7_249, %c0_250, %c0_251] : memref<2x8x2x96xf32, #tpu.memory_space<vmem>>, vector<1x1x2x96xf32>
    %496 = vector.shape_cast %495 : vector<1x1x2x96xf32> to vector<2x96xf32>
    %497 = vector.extract_strided_slice %496 {offsets = [0, 0], sizes = [2, 64], strides = [1, 1]} : vector<2x96xf32> to vector<2x64xf32>
    %498 = vector.extract_strided_slice %494 {offsets = [0, 0], sizes = [2, 64], strides = [1, 1]} : vector<2x96xf32> to vector<2x64xf32>
    %499 = arith.addf %497, %498 : vector<2x64xf32>
    %500 = arith.negf %499 : vector<2x64xf32>
    %501 = math.exp %500 : vector<2x64xf32>
    %cst_252 = arith.constant 1.000000e+00 : f32
    %502 = vector.broadcast %cst_252 : f32 to vector<2x64xf32>
    %503 = arith.addf %502, %501 : vector<2x64xf32>
    %504 = arith.divf %502, %503 : vector<2x64xf32>
    %505 = vector.extract_strided_slice %504 {offsets = [0, 0], sizes = [2, 32], strides = [1, 1]} : vector<2x64xf32> to vector<2x32xf32>
    %506 = vector.extract_strided_slice %504 {offsets = [0, 32], sizes = [2, 32], strides = [1, 1]} : vector<2x64xf32> to vector<2x32xf32>
    %507 = vector.extract_strided_slice %496 {offsets = [0, 64], sizes = [2, 32], strides = [1, 1]} : vector<2x96xf32> to vector<2x32xf32>
    %508 = vector.extract_strided_slice %494 {offsets = [0, 64], sizes = [2, 32], strides = [1, 1]} : vector<2x96xf32> to vector<2x32xf32>
    %509 = arith.mulf %505, %508 : vector<2x32xf32>
    %510 = arith.addf %507, %509 : vector<2x32xf32>
    %511 = math.tanh %510 : vector<2x32xf32>
    %cst_253 = arith.constant 1.000000e+00 : f32
    %512 = vector.broadcast %cst_253 : f32 to vector<2x32xf32>
    %513 = arith.subf %512, %506 : vector<2x32xf32>
    %514 = arith.mulf %513, %511 : vector<2x32xf32>
    %515 = arith.mulf %506, %450 : vector<2x32xf32>
    %516 = arith.addf %514, %515 : vector<2x32xf32>
    %517 = arith.truncf %480 : vector<2x32xf32> to vector<2x32xbf16>
    %c1_254 = arith.constant 1 : index
    %c0_255 = arith.constant 0 : index
    %c0_256 = arith.constant 0 : index
    %518 = vector.load %arg4[%c1_254, %c0_255, %c0_256] : memref<2x32x96xbf16, #tpu.memory_space<vmem>>, vector<1x32x96xbf16>
    %519 = vector.shape_cast %518 : vector<1x32x96xbf16> to vector<32x96xbf16>
    %cst_257 = arith.constant dense<0.000000e+00> : vector<2x96xf32>
    %520 = tpu.matmul %517, %519, %cst_257 {dimension_numbers = #tpu.dot_dimension_numbers<[1], [0], [0], [1], [0, 0, 1, 1], [], []>} : vector<2x32xbf16>, vector<32x96xbf16>, vector<2x96xf32> -> vector<2x96xf32>
    %c1_258 = arith.constant 1 : index
    %c0_259 = arith.constant 0 : index
    %c0_260 = arith.constant 0 : index
    %521 = vector.load %arg5[%c1_258, %c0_259, %c0_260] : memref<2x1x96xf32, #tpu.memory_space<vmem>>, vector<1x1x96xf32>
    %522 = vector.shape_cast %521 : vector<1x1x96xf32> to vector<1x96xf32>
    %523 = vector.broadcast %522 : vector<1x96xf32> to vector<2x96xf32>
    %524 = arith.addf %520, %523 : vector<2x96xf32>
    %c1_261 = arith.constant 1 : index
    %c0_262 = arith.constant 0 : index
    %c0_263 = arith.constant 0 : index
    %c0_264 = arith.constant 0 : index
    %525 = vector.load %arg7[%c1_261, %c0_262, %c0_263, %c0_264] : memref<2x8x2x96xf32, #tpu.memory_space<vmem>>, vector<1x1x2x96xf32>
    %526 = vector.shape_cast %525 : vector<1x1x2x96xf32> to vector<2x96xf32>
    %527 = vector.extract_strided_slice %526 {offsets = [0, 0], sizes = [2, 64], strides = [1, 1]} : vector<2x96xf32> to vector<2x64xf32>
    %528 = vector.extract_strided_slice %524 {offsets = [0, 0], sizes = [2, 64], strides = [1, 1]} : vector<2x96xf32> to vector<2x64xf32>
    %529 = arith.addf %527, %528 : vector<2x64xf32>
    %530 = arith.negf %529 : vector<2x64xf32>
    %531 = math.exp %530 : vector<2x64xf32>
    %cst_265 = arith.constant 1.000000e+00 : f32
    %532 = vector.broadcast %cst_265 : f32 to vector<2x64xf32>
    %533 = arith.addf %532, %531 : vector<2x64xf32>
    %534 = arith.divf %532, %533 : vector<2x64xf32>
    %535 = vector.extract_strided_slice %534 {offsets = [0, 0], sizes = [2, 32], strides = [1, 1]} : vector<2x64xf32> to vector<2x32xf32>
    %536 = vector.extract_strided_slice %534 {offsets = [0, 32], sizes = [2, 32], strides = [1, 1]} : vector<2x64xf32> to vector<2x32xf32>
    %537 = vector.extract_strided_slice %526 {offsets = [0, 64], sizes = [2, 32], strides = [1, 1]} : vector<2x96xf32> to vector<2x32xf32>
    %538 = vector.extract_strided_slice %524 {offsets = [0, 64], sizes = [2, 32], strides = [1, 1]} : vector<2x96xf32> to vector<2x32xf32>
    %539 = arith.mulf %535, %538 : vector<2x32xf32>
    %540 = arith.addf %537, %539 : vector<2x32xf32>
    %541 = math.tanh %540 : vector<2x32xf32>
    %cst_266 = arith.constant 1.000000e+00 : f32
    %542 = vector.broadcast %cst_266 : f32 to vector<2x32xf32>
    %543 = arith.subf %542, %536 : vector<2x32xf32>
    %544 = arith.mulf %543, %541 : vector<2x32xf32>
    %545 = arith.mulf %536, %480 : vector<2x32xf32>
    %546 = arith.addf %544, %545 : vector<2x32xf32>
    %c7_267 = arith.constant 7 : index
    %c0_268 = arith.constant 0 : index
    %c0_269 = arith.constant 0 : index
    %547 = vector.load %arg8[%c7_267, %c0_268, %c0_269] : memref<8x2x32xf32, #tpu.memory_space<vmem>>, vector<1x2x32xf32>
    %548 = vector.shape_cast %547 : vector<1x2x32xf32> to vector<2x32xf32>
    %549 = vector.shape_cast %516 : vector<2x32xf32> to vector<1x2x32xf32>
    tpu.vector_store %arg8[%c7_267, %c0_268, %c0_269], %549 {strides = array<i32>} : memref<8x2x32xf32, #tpu.memory_space<vmem>>, vector<1x2x32xf32>,
    %c0_270 = arith.constant 0 : index
    %c0_271 = arith.constant 0 : index
    %c0_272 = arith.constant 0 : index
    %550 = vector.load %arg9[%c0_270, %c0_271, %c0_272] : memref<8x2x32xf32, #tpu.memory_space<vmem>>, vector<1x2x32xf32>
    %551 = vector.shape_cast %550 : vector<1x2x32xf32> to vector<2x32xf32>
    %552 = vector.shape_cast %546 : vector<2x32xf32> to vector<1x2x32xf32>
    tpu.vector_store %arg9[%c0_270, %c0_271, %c0_272], %552 {strides = array<i32>} : memref<8x2x32xf32, #tpu.memory_space<vmem>>, vector<1x2x32xf32>,
    %c0_273 = arith.constant 0 : index
    %c0_274 = arith.constant 0 : index
    %c0_275 = arith.constant 0 : index
    %553 = vector.load %arg8[%c0_273, %c0_274, %c0_275] : memref<8x2x32xf32, #tpu.memory_space<vmem>>, vector<8x2x32xf32>
    %c0_276 = arith.constant 0 : index
    %c0_277 = arith.constant 0 : index
    %c0_278 = arith.constant 0 : index
    %554 = vector.load %arg9[%c0_276, %c0_277, %c0_278] : memref<8x2x32xf32, #tpu.memory_space<vmem>>, vector<8x2x32xf32>
    %555 = arith.addf %553, %554 : vector<8x2x32xf32>
    %556 = vector.shape_cast %555 : vector<8x2x32xf32> to vector<8x64xf32>
    %c0_279 = arith.constant 0 : index
    %c0_280 = arith.constant 0 : index
    %557 = vector.load %arg6[%c0_279, %c0_280] : memref<8x64xf32, #tpu.memory_space<vmem>>, vector<8x64xf32>
    tpu.vector_store %arg6[%c0_279, %c0_280], %556 {strides = array<i32>} : memref<8x64xf32, #tpu.memory_space<vmem>>, vector<8x64xf32>,
    return
  }
  func.func @transform_0(%arg0: i32) -> (i32, i32, i32) {
    %c0_i32 = arith.constant 0 : i32
    %c0_i32_0 = arith.constant 0 : i32
    %c0_i32_1 = arith.constant 0 : i32
    return %c0_i32, %arg0, %c0_i32_0 : i32, i32, i32
  }
  func.func @transform_1(%arg0: i32) -> (i32, i32, i32) {
    %c0_i32 = arith.constant 0 : i32
    %c0_i32_0 = arith.constant 0 : i32
    %c0_i32_1 = arith.constant 0 : i32
    %c0_i32_2 = arith.constant 0 : i32
    return %c0_i32, %c0_i32_0, %c0_i32_1 : i32, i32, i32
  }
  func.func @transform_2(%arg0: i32) -> (i32, i32, i32) {
    %c0_i32 = arith.constant 0 : i32
    %c0_i32_0 = arith.constant 0 : i32
    %c0_i32_1 = arith.constant 0 : i32
    %c0_i32_2 = arith.constant 0 : i32
    return %c0_i32, %c0_i32_0, %c0_i32_1 : i32, i32, i32
  }
  func.func @transform_3(%arg0: i32) -> (i32, i32, i32) {
    %c0_i32 = arith.constant 0 : i32
    %c0_i32_0 = arith.constant 0 : i32
    %c0_i32_1 = arith.constant 0 : i32
    %c0_i32_2 = arith.constant 0 : i32
    return %c0_i32, %c0_i32_0, %c0_i32_1 : i32, i32, i32
  }
  func.func @transform_4(%arg0: i32) -> (i32, i32, i32) {
    %c0_i32 = arith.constant 0 : i32
    %c0_i32_0 = arith.constant 0 : i32
    %c0_i32_1 = arith.constant 0 : i32
    %c0_i32_2 = arith.constant 0 : i32
    return %c0_i32, %c0_i32_0, %c0_i32_1 : i32, i32, i32
  }
  func.func @transform_5(%arg0: i32) -> (i32, i32) {
    %c0_i32 = arith.constant 0 : i32
    %c0_i32_0 = arith.constant 0 : i32
    return %c0_i32, %arg0 : i32, i32
  }
}

</mosaic_0001>

<llo_original>
// kernel: tpu_custom_call.1
$region0: #{tpu_custom_call.1}
  #allocation0 [shape = 'u32[]', space=smem, size = 0x4, offset = 0x4, fixed_abs, tag = 'smem constant byte address 0x4 - core index']
  #allocation1 [shape = 'u32[72,128]{1,0:T(1,128)}', space=vmem, size = 0x9000, scoped, tag = 'internal scratch']
  #allocation2 [shape = 'f32[2,8,2,96]{3,2,1,0:T(2,128)}', space=vmem, size = 0x4000, scoped, tag = 'scratch operand']
  #allocation3 [shape = 'f32[8,2,32]{2,1,0:T(2,128)}', space=vmem, size = 0x2000, scoped, tag = 'scratch operand']
  #allocation4 [shape = 'f32[8,2,32]{2,1,0:T(2,128)}', space=vmem, size = 0x2000, scoped, tag = 'scratch operand']
  %s0 = inlined_call_operand.hbm [shape: bf16[8,2,32], index: 0, kind: input, shape index: {}]
  %s1 = inlined_call_operand.hbm [shape: bf16[2,32,96], index: 1, kind: input, shape index: {}]
  %s2 = inlined_call_operand.hbm [shape: f32[2,1,96], index: 2, kind: input, shape index: {}]
  %s3 = inlined_call_operand.hbm [shape: bf16[2,32,96], index: 3, kind: input, shape index: {}]
  %s4 = inlined_call_operand.vmem [shape: f32[2,1,96], index: 4, kind: input, shape index: {}]
  %s5 = inlined_call_operand.hbm [shape: f32[8,64], index: 5, kind: output, shape index: {}]
  %s6 = sld [smem:[#allocation0]]
  $region46: #{tpu_custom_call.1} parent=0
    _
  %s8 = ssub.s32 1, %s6
  %s9 = scalar_select 0, %s8, %s6
  $region1: #{tpu_custom_call.1} parent=0
    #allocation5 [shape = 'u8[4096]{0}', space=vmem, size = 0x1000, scoped, tag = 'input window, operand 0, single buffered']
    #allocation6 [shape = 's32[1]{0}', space=sflag, size = 0x4, scoped, tag = 'scoped memory for tpu_custom_call.1']
    #allocation7 [shape = 's32[1]{0}', space=sflag, size = 0x4, scoped, tag = 'scoped memory for tpu_custom_call.1']
    #allocation8 [shape = 'u8[16384]{0}', space=vmem, size = 0x4000, scoped, tag = 'input window, operand 1, single buffered']
    #allocation9 [shape = 's32[1]{0}', space=sflag, size = 0x4, scoped, tag = 'scoped memory for tpu_custom_call.1']
    #allocation10 [shape = 'u8[1024]{0}', space=vmem, size = 0x400, scoped, tag = 'input window, operand 2, single buffered']
    #allocation11 [shape = 'u8[16384]{0}', space=vmem, size = 0x4000, scoped, tag = 'input window, operand 3, single buffered']
    #allocation12 [shape = 's32[1]{0}', space=sflag, size = 0x4, scoped, tag = 'scoped memory for tpu_custom_call.1']
    #allocation13 [shape = 'u8[4096]{0}', space=vmem, size = 0x1000, scoped, tag = 'output window, operand 0, single buffered']
    %10 = vsyncpa [#allocation6], 0
    %11 = vsyncpa [#allocation9], 0
    %12 = vsyncpa [#allocation12], 0
    %13 = vsyncpa [#allocation7], 0
    // Predicated region
    $region2: #{tpu_custom_call.1} parent=1 // pred_check
      _
    $region3: #{tpu_custom_call.1} parent=1 // pred_check_branch
      %15 = sbr.rel (0) target = $region5
    $region4: #{tpu_custom_call.1} parent=1 // pred_region
      %17 = vsyncadd [#allocation6], 0
      %s18 = sshll.u32 %s0, 4
      %s19 = int_to_ptr.hbm [resolvable:$true] %s18
      %s20 = sshll.u32 [#allocation5], 4
      %s21 = int_to_ptr.vmem [resolvable:$true] %s20
      %26 = dma.hbm_to_vmem [thread:$0]  %s19, 128, %s21, [#allocation6], 16, 16, 1
    $region5: #{tpu_custom_call.1} parent=1 // pred_fallthru
      _
    // Predicated region
    $region6: #{tpu_custom_call.1} parent=1 // pred_check
      _
    $region7: #{tpu_custom_call.1} parent=1 // pred_check_branch
      %28 = sbr.rel (0) target = $region9
    $region8: #{tpu_custom_call.1} parent=1 // pred_region
      %30 = vsyncadd [#allocation9], 0
      %s31 = sshll.u32 %s1, 4
      %s32 = int_to_ptr.hbm [resolvable:$true] %s31
      %s33 = sshll.u32 [#allocation8], 4
      %s34 = int_to_ptr.vmem [resolvable:$true] %s33
      %39 = dma.hbm_to_vmem [thread:$0]  %s32, 512, %s34, [#allocation9], 64, 64, 4
    $region9: #{tpu_custom_call.1} parent=1 // pred_fallthru
      _
    // Predicated region
    $region10: #{tpu_custom_call.1} parent=1 // pred_check
      _
    $region11: #{tpu_custom_call.1} parent=1 // pred_check_branch
      %41 = sbr.rel (0) target = $region13
    $region12: #{tpu_custom_call.1} parent=1 // pred_region
      %43 = vsyncadd [#allocation9], 0
      %s44 = sshll.u32 %s2, 4
      %s45 = int_to_ptr.hbm [resolvable:$true] %s44
      %s46 = sshll.u32 [#allocation10], 4
      %s47 = int_to_ptr.vmem [resolvable:$true] %s46
      %52 = dma.hbm_to_vmem [thread:$0]  %s45, 32, %s47, [#allocation9], 16, 16, 1
    $region13: #{tpu_custom_call.1} parent=1 // pred_fallthru
      _
    // Predicated region
    $region14: #{tpu_custom_call.1} parent=1 // pred_check
      _
    $region15: #{tpu_custom_call.1} parent=1 // pred_check_branch
      %54 = sbr.rel (0) target = $region17
    $region16: #{tpu_custom_call.1} parent=1 // pred_region
      %56 = vsyncadd [#allocation12], 0
      %s57 = sshll.u32 %s3, 4
      %s58 = int_to_ptr.hbm [resolvable:$true] %s57
      %s59 = sshll.u32 [#allocation11], 4
      %s60 = int_to_ptr.vmem [resolvable:$true] %s59
      %65 = dma.hbm_to_vmem [thread:$0]  %s58, 512, %s60, [#allocation12], 64, 64, 4
    $region17: #{tpu_custom_call.1} parent=1 // pred_fallthru
      _
    // Predicated region
    $region18: #{tpu_custom_call.1} parent=1 // pred_check
      _
    $region19: #{tpu_custom_call.1} parent=1 // pred_check_branch
      %67 = sbr.rel (0) target = $region21
    $region20: #{tpu_custom_call.1} parent=1 // pred_region
      _
    $region21: #{tpu_custom_call.1} parent=1 // pred_fallthru
      _
    // Predicated region
    $region22: #{tpu_custom_call.1} parent=1 // pred_check
      _
    $region23: #{tpu_custom_call.1} parent=1 // pred_check_branch
      %69 = sbr.rel (0) target = $region25
    $region24: #{tpu_custom_call.1} parent=1 // pred_region
      %71 = dma.done [#allocation6], 128
    $region25: #{tpu_custom_call.1} parent=1 // pred_fallthru
      _
    // Predicated region
    $region26: #{tpu_custom_call.1} parent=1 // pred_check
      _
    $region27: #{tpu_custom_call.1} parent=1 // pred_check_branch
      %73 = sbr.rel (0) target = $region29
    $region28: #{tpu_custom_call.1} parent=1 // pred_region
      %75 = dma.done [#allocation9], 512
    $region29: #{tpu_custom_call.1} parent=1 // pred_fallthru
      _
    // Predicated region
    $region30: #{tpu_custom_call.1} parent=1 // pred_check
      _
    $region31: #{tpu_custom_call.1} parent=1 // pred_check_branch
      %77 = sbr.rel (0) target = $region33
    $region32: #{tpu_custom_call.1} parent=1 // pred_region
      %79 = dma.done [#allocation9], 32
    $region33: #{tpu_custom_call.1} parent=1 // pred_fallthru
      _
    // Predicated region
    $region34: #{tpu_custom_call.1} parent=1 // pred_check
      _
    $region35: #{tpu_custom_call.1} parent=1 // pred_check_branch
      %81 = sbr.rel (0) target = $region37
    $region36: #{tpu_custom_call.1} parent=1 // pred_region
      %83 = dma.done [#allocation12], 512
    $region37: #{tpu_custom_call.1} parent=1 // pred_fallthru
      _
    %v85 = vld [vmem:[#allocation5] sm:$0x1]
    %v86 = vld [vmem:[#allocation5 + $0x1] sm:$0x1]
    %v87 = vld [vmem:[#allocation5 + $0x2] sm:$0x1]
    %v88 = vld [vmem:[#allocation5 + $0x3] sm:$0x1]
    %v89 = vld [vmem:[#allocation5 + $0x4] sm:$0x1]
    %v90 = vld [vmem:[#allocation5 + $0x5] sm:$0x1]
    %v91 = vld [vmem:[#allocation5 + $0x6] sm:$0x1]
    %v92 = vld [vmem:[#allocation5 + $0x7] sm:$0x1]
    %v93 = vld [vmem:[#allocation8] sm:$0xf]
    %v94 = vld [vmem:[#allocation8 + $0x4] sm:$0xf]
    %v95 = vld [vmem:[#allocation8 + $0x8] sm:$0xf]
    %v96 = vld [vmem:[#allocation8 + $0xc] sm:$0xf]
    %v97 = vld [vmem:[#allocation10] sm:$0x1]
    %v99 = vperm.slane %v97, 0
    %102 = vst [vmem:[#allocation1] ss:$9 sm:$0xff] %v85
    %s104 = scalar_lea.vmem [#allocation1], 1
    %105 = vst [vmem:[%s104] ss:$9 sm:$0xff] %v86
    %s107 = scalar_lea.vmem [#allocation1], 2
    %108 = vst [vmem:[%s107] ss:$9 sm:$0xff] %v87
    %s110 = scalar_lea.vmem [#allocation1], 3
    %111 = vst [vmem:[%s110] ss:$9 sm:$0xff] %v88
    %s113 = scalar_lea.vmem [#allocation1], 4
    %114 = vst [vmem:[%s113] ss:$9 sm:$0xff] %v89
    %s116 = scalar_lea.vmem [#allocation1], 5
    %117 = vst [vmem:[%s116] ss:$9 sm:$0xff] %v90
    %s119 = scalar_lea.vmem [#allocation1], 6
    %120 = vst [vmem:[%s119] ss:$9 sm:$0xff] %v91
    %s122 = scalar_lea.vmem [#allocation1], 7
    %123 = vst [vmem:[%s122] ss:$9 sm:$0xff] %v92
    %v124 = vld [vmem:[#allocation1] sm:$0xff]
    %v129 = vunpack.c.l.b16 %v93
    %v130 = vunpack.c.l.b16 %v94
    %v131 = vunpack.c.l.b16 %v95
    %v132 = vunpack.c.l.b16 %v96
    %v133 = vpack.c.b16 %v130, %v129
    %v134 = vpack.c.b16 %v132, %v131
    %vm137 = vcmask 261120
    %v138 = vsel %vm137, %v124, 0
    %140 = vmatpush.bf16.msra.mxu0 0
    %141 = vmatpush.bf16.msra.mxu0 0
    %142 = vmatpush.bf16.msra.mxu0 0
    %143 = vmatpush.bf16.msra.mxu0 0
    %144 = vmatpush.bf16.msra.mxu0 0
    %145 = vmatpush.bf16.msra.mxu0 0
    %146 = vmatpush.bf16.msra.mxu0 %v134
    %147 = vmatpush.bf16.msra.mxu0 %v133
    %148 = vmatmul.bf16.gmra.mxu0 %v138
    %v149 = vpop.f32.mrf.mxu0
    %v150 = vadd.f32 %v99, %v149
    %v151 = vpop.f32.mrf.mxu0
    %v152 = vadd.f32 %v99, %v151
    %153 = vdwg.mxu0
    %v156 = vrot.slane %v150, 2
    %v157 = vrot.slane %v150, 4
    %v158 = vrot.slane %v150, 6
    %v159 = vrot.slane %v152, 2
    %v160 = vrot.slane %v152, 4
    %v161 = vrot.slane %v152, 6
    %vm168 = vcmask 779264
    %169 = vst.msk [vmem:[#allocation2] sm:$0x3] %vm168, %v150
    %170 = vst.msk [vmem:[#allocation2 + $0x2] sm:$0x3] %vm168, %v156
    %171 = vst.msk [vmem:[#allocation2 + $0x4] sm:$0x3] %vm168, %v157
    %172 = vst.msk [vmem:[#allocation2 + $0x6] sm:$0x3] %vm168, %v158
    %173 = vst.msk [vmem:[#allocation2 + $0x8] sm:$0x3] %vm168, %v152
    %174 = vst.msk [vmem:[#allocation2 + $0xa] sm:$0x3] %vm168, %v159
    %175 = vst.msk [vmem:[#allocation2 + $0xc] sm:$0x3] %vm168, %v160
    %176 = vst.msk [vmem:[#allocation2 + $0xe] sm:$0x3] %vm168, %v161
    %s177 = scalar_lea.vmem [#allocation8], 16
    %v178 = vld [vmem:[%s177] sm:$0xf]
    %v179 = vld [vmem:[%s177 + $0x4] sm:$0xf]
    %v180 = vld [vmem:[%s177 + $0x8] sm:$0xf]
    %v181 = vld [vmem:[%s177 + $0xc] sm:$0xf]
    %s182 = scalar_lea.vmem [#allocation10], 1
    %v183 = vld [vmem:[%s182] sm:$0x1]
    %v185 = vperm.slane %v183, 0
    %187 = vst [vmem:[#allocation1] ss:$9 sm:$0xff] %v85
    %s188 = scalar_lea.vmem [#allocation1], 1
    %189 = vst [vmem:[%s188] ss:$9 sm:$0xff] %v86
    %s190 = scalar_lea.vmem [#allocation1], 2
    %191 = vst [vmem:[%s190] ss:$9 sm:$0xff] %v87
    %s192 = scalar_lea.vmem [#allocation1], 3
    %193 = vst [vmem:[%s192] ss:$9 sm:$0xff] %v88
    %s194 = scalar_lea.vmem [#allocation1], 4
    %195 = vst [vmem:[%s194] ss:$9 sm:$0xff] %v89
    %s196 = scalar_lea.vmem [#allocation1], 5
    %197 = vst [vmem:[%s196] ss:$9 sm:$0xff] %v90
    %s198 = scalar_lea.vmem [#allocation1], 6
    %199 = vst [vmem:[%s198] ss:$9 sm:$0xff] %v91
    %s200 = scalar_lea.vmem [#allocation1], 7
    %201 = vst [vmem:[%s200] ss:$9 sm:$0xff] %v92
    %v202 = vld [vmem:[#allocation1] sm:$0xff]
    %v207 = vunpack.c.l.b16 %v178
    %v208 = vunpack.c.l.b16 %v179
    %v209 = vunpack.c.l.b16 %v180
    %v210 = vunpack.c.l.b16 %v181
    %v211 = vpack.c.b16 %v208, %v207
    %v212 = vpack.c.b16 %v210, %v209
    %v215 = vsel %vm137, %v202, 0
    %217 = vmatpush.bf16.msra.mxu0 0
    %218 = vmatpush.bf16.msra.mxu0 0
    %219 = vmatpush.bf16.msra.mxu0 0
    %220 = vmatpush.bf16.msra.mxu0 0
    %221 = vmatpush.bf16.msra.mxu0 0
    %222 = vmatpush.bf16.msra.mxu0 0
    %223 = vmatpush.bf16.msra.mxu0 %v212
    %224 = vmatpush.bf16.msra.mxu0 %v211
    %225 = vmatmul.bf16.gmra.mxu0 %v215
    %v226 = vpop.f32.mrf.mxu0
    %v227 = vadd.f32 %v185, %v226
    %v228 = vpop.f32.mrf.mxu0
    %v229 = vadd.f32 %v185, %v228
    %230 = vdwg.mxu0
    %v233 = vrot.slane %v227, 2
    %v234 = vrot.slane %v227, 4
    %v235 = vrot.slane %v227, 6
    %v236 = vrot.slane %v229, 2
    %v237 = vrot.slane %v229, 4
    %v238 = vrot.slane %v229, 6
    %s245 = scalar_lea.vmem [#allocation2], 16
    %246 = vst.msk [vmem:[%s245] sm:$0x3] %vm168, %v227
    %247 = vst.msk [vmem:[%s245 + $0x2] sm:$0x3] %vm168, %v233
    %248 = vst.msk [vmem:[%s245 + $0x4] sm:$0x3] %vm168, %v234
    %249 = vst.msk [vmem:[%s245 + $0x6] sm:$0x3] %vm168, %v235
    %250 = vst.msk [vmem:[%s245 + $0x8] sm:$0x3] %vm168, %v229
    %251 = vst.msk [vmem:[%s245 + $0xa] sm:$0x3] %vm168, %v236
    %252 = vst.msk [vmem:[%s245 + $0xc] sm:$0x3] %vm168, %v237
    %253 = vst.msk [vmem:[%s245 + $0xe] sm:$0x3] %vm168, %v238
    %v254 = vld [vmem:[#allocation11] sm:$0xf]
    %v255 = vld [vmem:[#allocation11 + $0x4] sm:$0xf]
    %v256 = vld [vmem:[#allocation11 + $0x8] sm:$0xf]
    %v257 = vld [vmem:[#allocation11 + $0xc] sm:$0xf]
    %v258 = vld [vmem:[%s4] sm:$0x1]
    %v260 = vperm.slane %v258, 0
    %v266 = vunpack.c.l.b16 %v254
    %v267 = vunpack.c.l.b16 %v255
    %v268 = vunpack.c.l.b16 %v256
    %v269 = vunpack.c.l.b16 %v257
    %v270 = vpack.c.b16 %v267, %v266
    %v271 = vpack.c.b16 %v269, %v268
    %v275 = vsel %vm137, 0, 0
    %277 = vmatpush.bf16.msra.mxu0 0
    %278 = vmatpush.bf16.msra.mxu0 0
    %279 = vmatpush.bf16.msra.mxu0 0
    %280 = vmatpush.bf16.msra.mxu0 0
    %281 = vmatpush.bf16.msra.mxu0 0
    %282 = vmatpush.bf16.msra.mxu0 0
    %283 = vmatpush.bf16.msra.mxu0 %v271
    %284 = vmatpush.bf16.msra.mxu0 %v270
    %285 = vmatmul.bf16.gmra.mxu0 %v275
    %v286 = vpop.f32.mrf.mxu0
    %v287 = vadd.f32 %v260, %v286
    %v288 = vpop.f32.mrf.mxu0
    %289 = vdwg.mxu0
    %v290 = vld [vmem:[#allocation2] sm:$0x3]
    %v291 = vadd.f32 %v290, %v287
    %v292 = vxor.u32 %v291, 2147483648
    %v293 = vmul.f32 %v292, 1.442695
    %v294 = vpow.pop %v293
    %v295 = vadd.f32 %v294, 1.0
    %v296 = vrcp.pop %v295
    %v297 = vmul.f32 %v295, %v296
    %v298 = vsub.f32 1.0, %v297
    %v299 = vmul.f32 %v296, %v298
    %v300 = vadd.f32 %v296, %v299
    %vm301 = vweird.f32 %v295
    %vm302 = vweird.f32 %v296
    %vm303 = vmor %vm301, %vm302
    %v304 = vsel %vm303, %v296, %v300
    %v305 = vand.u32 2147483647, %v295
    %vm306 = vcmp.eq.f32.partialorder %v305, 8.507059e+37
    %v307 = vand.u32 %v295, 2147483648
    %v308 = vor.u32 1.1754944e-38, %v307
    %v309 = vsel %vm306, %v308, %v304
    %v310 = vmul.f32 1.0, %v309
    %312 = vrot.lane.b32.xlu0 %v287, 64
    %v313 = vpop.permute.xlu0 %312
    %v315 = vmul.f32 %v310, %v313
    %317 = vrot.lane.b32.xlu0 %v315, 64
    %v318 = vpop.permute.xlu0 %317
    %v320 = vadd.f32 %v290, %v318
    %v321 = vtanh.pop %v320
    %v322 = vsub.f32 1.0, %v310
    %324 = vrot.lane.b32.xlu0 %v321, 96
    %v325 = vpop.permute.xlu0 %324
    %v327 = vmul.f32 %v322, %v325
    %v328 = vmul.f32 %v310, 0.0
    %v329 = vadd.f32 %v327, %v328
    %s330 = scalar_lea.vmem [#allocation11], 16
    %v331 = vld [vmem:[%s330] sm:$0xf]
    %v332 = vld [vmem:[%s330 + $0x4] sm:$0xf]
    %v333 = vld [vmem:[%s330 + $0x8] sm:$0xf]
    %v334 = vld [vmem:[%s330 + $0xc] sm:$0xf]
    %s335 = scalar_lea.vmem %s4, 1
    %v336 = vld [vmem:[%s335] sm:$0x1]
    %v338 = vperm.slane %v336, 0
    %v344 = vunpack.c.l.b16 %v331
    %v345 = vunpack.c.l.b16 %v332
    %v346 = vunpack.c.l.b16 %v333
    %v347 = vunpack.c.l.b16 %v334
    %v348 = vpack.c.b16 %v345, %v344
    %v349 = vpack.c.b16 %v347, %v346
    %352 = vmatpush.bf16.msra.mxu0 0
    %353 = vmatpush.bf16.msra.mxu0 0
    %354 = vmatpush.bf16.msra.mxu0 0
    %355 = vmatpush.bf16.msra.mxu0 0
    %356 = vmatpush.bf16.msra.mxu0 0
    %357 = vmatpush.bf16.msra.mxu0 0
    %358 = vmatpush.bf16.msra.mxu0 %v349
    %359 = vmatpush.bf16.msra.mxu0 %v348
    %360 = vmatmul.bf16.gmra.mxu0 %v275
    %v361 = vpop.f32.mrf.mxu0
    %v362 = vadd.f32 %v338, %v361
    %v363 = vpop.f32.mrf.mxu0
    %364 = vdwg.mxu0
    %s365 = scalar_lea.vmem [#allocation2], 30
    %v366 = vld [vmem:[%s365] sm:$0x3]
    %v367 = vadd.f32 %v366, %v362
    %v368 = vxor.u32 %v367, 2147483648
    %v369 = vmul.f32 %v368, 1.442695
    %v370 = vpow.pop %v369
    %v371 = vadd.f32 %v370, 1.0
    %v372 = vrcp.pop %v371
    %v373 = vmul.f32 %v371, %v372
    %v374 = vsub.f32 1.0, %v373
    %v375 = vmul.f32 %v372, %v374
    %v376 = vadd.f32 %v372, %v375
    %vm377 = vweird.f32 %v371
    %vm378 = vweird.f32 %v372
    %vm379 = vmor %vm377, %vm378
    %v380 = vsel %vm379, %v372, %v376
    %v381 = vand.u32 2147483647, %v371
    %vm382 = vcmp.eq.f32.partialorder %v381, 8.507059e+37
    %v383 = vand.u32 %v371, 2147483648
    %v384 = vor.u32 1.1754944e-38, %v383
    %v385 = vsel %vm382, %v384, %v380
    %v386 = vmul.f32 1.0, %v385
    %388 = vrot.lane.b32.xlu0 %v362, 64
    %v389 = vpop.permute.xlu0 %388
    %v391 = vmul.f32 %v386, %v389
    %393 = vrot.lane.b32.xlu0 %v391, 64
    %v394 = vpop.permute.xlu0 %393
    %v396 = vadd.f32 %v366, %v394
    %v397 = vtanh.pop %v396
    %v398 = vsub.f32 1.0, %v386
    %400 = vrot.lane.b32.xlu0 %v397, 96
    %v401 = vpop.permute.xlu0 %400
    %v403 = vmul.f32 %v398, %v401
    %v404 = vmul.f32 %v386, 0.0
    %v405 = vadd.f32 %v403, %v404
    %407 = vrot.lane.b32.xlu0 %v329, 96
    %v408 = vpop.permute.xlu0 %407
    %vm410 = vcmask 254976
    %411 = vst.msk [vmem:[#allocation3] sm:$0x3] %vm410, %v408
    %413 = vrot.lane.b32.xlu0 %v405, 96
    %v414 = vpop.permute.xlu0 %413
    %s416 = scalar_lea.vmem [#allocation4], 14
    %417 = vst.msk [vmem:[%s416] sm:$0x3] %vm410, %v414
    %v418 = vpack.c.bf16 %v329, %v329
    %v419 = vld [vmem:[#allocation11] sm:$0xf]
    %v420 = vld [vmem:[#allocation11 + $0x4] sm:$0xf]
    %v421 = vld [vmem:[#allocation11 + $0x8] sm:$0xf]
    %v422 = vld [vmem:[#allocation11 + $0xc] sm:$0xf]
    %v423 = vld [vmem:[%s4] sm:$0x1]
    %v425 = vperm.slane %v423, 0
    %428 = vrot.lane.b32.xlu0 %v418, 96
    %v429 = vpop.permute.xlu0 %428
    %v434 = vunpack.c.l.b16 %v419
    %v435 = vunpack.c.l.b16 %v420
    %v436 = vunpack.c.l.b16 %v421
    %v437 = vunpack.c.l.b16 %v422
    %v438 = vpack.c.b16 %v435, %v434
    %v439 = vpack.c.b16 %v437, %v436
    %v443 = vsel %vm137, %v429, 0
    %445 = vmatpush.bf16.msra.mxu0 0
    %446 = vmatpush.bf16.msra.mxu0 0
    %447 = vmatpush.bf16.msra.mxu0 0
    %448 = vmatpush.bf16.msra.mxu0 0
    %449 = vmatpush.bf16.msra.mxu0 0
    %450 = vmatpush.bf16.msra.mxu0 0
    %451 = vmatpush.bf16.msra.mxu0 %v439
    %452 = vmatpush.bf16.msra.mxu0 %v438
    %453 = vmatmul.bf16.gmra.mxu0 %v443
    %v454 = vpop.f32.mrf.mxu0
    %v455 = vadd.f32 %v425, %v454
    %v456 = vpop.f32.mrf.mxu0
    %457 = vdwg.mxu0
    %s458 = scalar_lea.vmem [#allocation2], 2
    %v459 = vld [vmem:[%s458] sm:$0x3]
    %v460 = vadd.f32 %v459, %v455
    %v461 = vxor.u32 %v460, 2147483648
    %v462 = vmul.f32 %v461, 1.442695
    %v463 = vpow.pop %v462
    %v464 = vadd.f32 %v463, 1.0
    %v465 = vrcp.pop %v464
    %v466 = vmul.f32 %v464, %v465
    %v467 = vsub.f32 1.0, %v466
    %v468 = vmul.f32 %v465, %v467
    %v469 = vadd.f32 %v465, %v468
    %vm470 = vweird.f32 %v464
    %vm471 = vweird.f32 %v465
    %vm472 = vmor %vm470, %vm471
    %v473 = vsel %vm472, %v465, %v469
    %v474 = vand.u32 2147483647, %v464
    %vm475 = vcmp.eq.f32.partialorder %v474, 8.507059e+37
    %v476 = vand.u32 %v464, 2147483648
    %v477 = vor.u32 1.1754944e-38, %v476
    %v478 = vsel %vm475, %v477, %v473
    %v479 = vmul.f32 1.0, %v478
    %481 = vrot.lane.b32.xlu0 %v455, 64
    %v482 = vpop.permute.xlu0 %481
    %v484 = vmul.f32 %v479, %v482
    %486 = vrot.lane.b32.xlu0 %v484, 64
    %v487 = vpop.permute.xlu0 %486
    %v489 = vadd.f32 %v459, %v487
    %v490 = vtanh.pop %v489
    %v491 = vsub.f32 1.0, %v479
    %493 = vrot.lane.b32.xlu0 %v490, 96
    %v494 = vpop.permute.xlu0 %493
    %v496 = vmul.f32 %v491, %v494
    %v497 = vmul.f32 %v479, %v329
    %v498 = vadd.f32 %v496, %v497
    %v499 = vpack.c.bf16 %v405, %v405
    %v500 = vld [vmem:[%s330] sm:$0xf]
    %v501 = vld [vmem:[%s330 + $0x4] sm:$0xf]
    %v502 = vld [vmem:[%s330 + $0x8] sm:$0xf]
    %v503 = vld [vmem:[%s330 + $0xc] sm:$0xf]
    %v504 = vld [vmem:[%s335] sm:$0x1]
    %v506 = vperm.slane %v504, 0
    %509 = vrot.lane.b32.xlu0 %v499, 96
    %v510 = vpop.permute.xlu0 %509
    %v515 = vunpack.c.l.b16 %v500
    %v516 = vunpack.c.l.b16 %v501
    %v517 = vunpack.c.l.b16 %v502
    %v518 = vunpack.c.l.b16 %v503
    %v519 = vpack.c.b16 %v516, %v515
    %v520 = vpack.c.b16 %v518, %v517
    %v524 = vsel %vm137, %v510, 0
    %526 = vmatpush.bf16.msra.mxu0 0
    %527 = vmatpush.bf16.msra.mxu0 0
    %528 = vmatpush.bf16.msra.mxu0 0
    %529 = vmatpush.bf16.msra.mxu0 0
    %530 = vmatpush.bf16.msra.mxu0 0
    %531 = vmatpush.bf16.msra.mxu0 0
    %532 = vmatpush.bf16.msra.mxu0 %v520
    %533 = vmatpush.bf16.msra.mxu0 %v519
    %534 = vmatmul.bf16.gmra.mxu0 %v524
    %v535 = vpop.f32.mrf.mxu0
    %v536 = vadd.f32 %v506, %v535
    %v537 = vpop.f32.mrf.mxu0
    %538 = vdwg.mxu0
    %s539 = scalar_lea.vmem [#allocation2], 28
    %v540 = vld [vmem:[%s539] sm:$0x3]
    %v541 = vadd.f32 %v540, %v536
    %v542 = vxor.u32 %v541, 2147483648
    %v543 = vmul.f32 %v542, 1.442695
    %v544 = vpow.pop %v543
    %v545 = vadd.f32 %v544, 1.0
    %v546 = vrcp.pop %v545
    %v547 = vmul.f32 %v545, %v546
    %v548 = vsub.f32 1.0, %v547
    %v549 = vmul.f32 %v546, %v548
    %v550 = vadd.f32 %v546, %v549
    %vm551 = vweird.f32 %v545
    %vm552 = vweird.f32 %v546
    %vm553 = vmor %vm551, %vm552
    %v554 = vsel %vm553, %v546, %v550
    %v555 = vand.u32 2147483647, %v545
    %vm556 = vcmp.eq.f32.partialorder %v555, 8.507059e+37
    %v557 = vand.u32 %v545, 2147483648
    %v558 = vor.u32 1.1754944e-38, %v557
    %v559 = vsel %vm556, %v558, %v554
    %v560 = vmul.f32 1.0, %v559
    %562 = vrot.lane.b32.xlu0 %v536, 64
    %v563 = vpop.permute.xlu0 %562
    %v565 = vmul.f32 %v560, %v563
    %567 = vrot.lane.b32.xlu0 %v565, 64
    %v568 = vpop.permute.xlu0 %567
    %v570 = vadd.f32 %v540, %v568
    %v571 = vtanh.pop %v570
    %v572 = vsub.f32 1.0, %v560
    %574 = vrot.lane.b32.xlu0 %v571, 96
    %v575 = vpop.permute.xlu0 %574
    %v577 = vmul.f32 %v572, %v575
    %v578 = vmul.f32 %v560, %v405
    %v579 = vadd.f32 %v577, %v578
    %581 = vrot.lane.b32.xlu0 %v498, 96
    %v582 = vpop.permute.xlu0 %581
    %s584 = scalar_lea.vmem [#allocation3], 2
    %585 = vst.msk [vmem:[%s584] sm:$0x3] %vm410, %v582
    %587 = vrot.lane.b32.xlu0 %v579, 96
    %v588 = vpop.permute.xlu0 %587
    %s590 = scalar_lea.vmem [#allocation4], 12
    %591 = vst.msk [vmem:[%s590] sm:$0x3] %vm410, %v588
    %v592 = vpack.c.bf16 %v498, %v498
    %v593 = vld [vmem:[#allocation11] sm:$0xf]
    %v594 = vld [vmem:[#allocation11 + $0x4] sm:$0xf]
    %v595 = vld [vmem:[#allocation11 + $0x8] sm:$0xf]
    %v596 = vld [vmem:[#allocation11 + $0xc] sm:$0xf]
    %v597 = vld [vmem:[%s4] sm:$0x1]
    %v599 = vperm.slane %v597, 0
    %602 = vrot.lane.b32.xlu0 %v592, 96
    %v603 = vpop.permute.xlu0 %602
    %v608 = vunpack.c.l.b16 %v593
    %v609 = vunpack.c.l.b16 %v594
    %v610 = vunpack.c.l.b16 %v595
    %v611 = vunpack.c.l.b16 %v596
    %v612 = vpack.c.b16 %v609, %v608
    %v613 = vpack.c.b16 %v611, %v610
    %v617 = vsel %vm137, %v603, 0
    %619 = vmatpush.bf16.msra.mxu0 0
    %620 = vmatpush.bf16.msra.mxu0 0
    %621 = vmatpush.bf16.msra.mxu0 0
    %622 = vmatpush.bf16.msra.mxu0 0
    %623 = vmatpush.bf16.msra.mxu0 0
    %624 = vmatpush.bf16.msra.mxu0 0
    %625 = vmatpush.bf16.msra.mxu0 %v613
    %626 = vmatpush.bf16.msra.mxu0 %v612
    %627 = vmatmul.bf16.gmra.mxu0 %v617
    %v628 = vpop.f32.mrf.mxu0
    %v629 = vadd.f32 %v599, %v628
    %v630 = vpop.f32.mrf.mxu0
    %631 = vdwg.mxu0
    %s632 = scalar_lea.vmem [#allocation2], 4
    %v633 = vld [vmem:[%s632] sm:$0x3]
    %v634 = vadd.f32 %v633, %v629
    %v635 = vxor.u32 %v634, 2147483648
    %v636 = vmul.f32 %v635, 1.442695
    %v637 = vpow.pop %v636
    %v638 = vadd.f32 %v637, 1.0
    %v639 = vrcp.pop %v638
    %v640 = vmul.f32 %v638, %v639
    %v641 = vsub.f32 1.0, %v640
    %v642 = vmul.f32 %v639, %v641
    %v643 = vadd.f32 %v639, %v642
    %vm644 = vweird.f32 %v638
    %vm645 = vweird.f32 %v639
    %vm646 = vmor %vm644, %vm645
    %v647 = vsel %vm646, %v639, %v643
    %v648 = vand.u32 2147483647, %v638
    %vm649 = vcmp.eq.f32.partialorder %v648, 8.507059e+37
    %v650 = vand.u32 %v638, 2147483648
    %v651 = vor.u32 1.1754944e-38, %v650
    %v652 = vsel %vm649, %v651, %v647
    %v653 = vmul.f32 1.0, %v652
    %655 = vrot.lane.b32.xlu0 %v629, 64
    %v656 = vpop.permute.xlu0 %655
    %v658 = vmul.f32 %v653, %v656
    %660 = vrot.lane.b32.xlu0 %v658, 64
    %v661 = vpop.permute.xlu0 %660
    %v663 = vadd.f32 %v633, %v661
    %v664 = vtanh.pop %v663
    %v665 = vsub.f32 1.0, %v653
    %667 = vrot.lane.b32.xlu0 %v664, 96
    %v668 = vpop.permute.xlu0 %667
    %v670 = vmul.f32 %v665, %v668
    %v671 = vmul.f32 %v653, %v498
    %v672 = vadd.f32 %v670, %v671
    %v673 = vpack.c.bf16 %v579, %v579
    %v674 = vld [vmem:[%s330] sm:$0xf]
    %v675 = vld [vmem:[%s330 + $0x4] sm:$0xf]
    %v676 = vld [vmem:[%s330 + $0x8] sm:$0xf]
    %v677 = vld [vmem:[%s330 + $0xc] sm:$0xf]
    %v678 = vld [vmem:[%s335] sm:$0x1]
    %v680 = vperm.slane %v678, 0
    %683 = vrot.lane.b32.xlu0 %v673, 96
    %v684 = vpop.permute.xlu0 %683
    %v689 = vunpack.c.l.b16 %v674
    %v690 = vunpack.c.l.b16 %v675
    %v691 = vunpack.c.l.b16 %v676
    %v692 = vunpack.c.l.b16 %v677
    %v693 = vpack.c.b16 %v690, %v689
    %v694 = vpack.c.b16 %v692, %v691
    %v698 = vsel %vm137, %v684, 0
    %700 = vmatpush.bf16.msra.mxu0 0
    %701 = vmatpush.bf16.msra.mxu0 0
    %702 = vmatpush.bf16.msra.mxu0 0
    %703 = vmatpush.bf16.msra.mxu0 0
    %704 = vmatpush.bf16.msra.mxu0 0
    %705 = vmatpush.bf16.msra.mxu0 0
    %706 = vmatpush.bf16.msra.mxu0 %v694
    %707 = vmatpush.bf16.msra.mxu0 %v693
    %708 = vmatmul.bf16.gmra.mxu0 %v698
    %v709 = vpop.f32.mrf.mxu0
    %v710 = vadd.f32 %v680, %v709
    %v711 = vpop.f32.mrf.mxu0
    %712 = vdwg.mxu0
    %s713 = scalar_lea.vmem [#allocation2], 26
    %v714 = vld [vmem:[%s713] sm:$0x3]
    %v715 = vadd.f32 %v714, %v710
    %v716 = vxor.u32 %v715, 2147483648
    %v717 = vmul.f32 %v716, 1.442695
    %v718 = vpow.pop %v717
    %v719 = vadd.f32 %v718, 1.0
    %v720 = vrcp.pop %v719
    %v721 = vmul.f32 %v719, %v720
    %v722 = vsub.f32 1.0, %v721
    %v723 = vmul.f32 %v720, %v722
    %v724 = vadd.f32 %v720, %v723
    %vm725 = vweird.f32 %v719
    %vm726 = vweird.f32 %v720
    %vm727 = vmor %vm725, %vm726
    %v728 = vsel %vm727, %v720, %v724
    %v729 = vand.u32 2147483647, %v719
    %vm730 = vcmp.eq.f32.partialorder %v729, 8.507059e+37
    %v731 = vand.u32 %v719, 2147483648
    %v732 = vor.u32 1.1754944e-38, %v731
    %v733 = vsel %vm730, %v732, %v728
    %v734 = vmul.f32 1.0, %v733
    %736 = vrot.lane.b32.xlu0 %v710, 64
    %v737 = vpop.permute.xlu0 %736
    %v739 = vmul.f32 %v734, %v737
    %741 = vrot.lane.b32.xlu0 %v739, 64
    %v742 = vpop.permute.xlu0 %741
    %v744 = vadd.f32 %v714, %v742
    %v745 = vtanh.pop %v744
    %v746 = vsub.f32 1.0, %v734
    %748 = vrot.lane.b32.xlu0 %v745, 96
    %v749 = vpop.permute.xlu0 %748
    %v751 = vmul.f32 %v746, %v749
    %v752 = vmul.f32 %v734, %v579
    %v753 = vadd.f32 %v751, %v752
    %755 = vrot.lane.b32.xlu0 %v672, 96
    %v756 = vpop.permute.xlu0 %755
    %s758 = scalar_lea.vmem [#allocation3], 4
    %759 = vst.msk [vmem:[%s758] sm:$0x3] %vm410, %v756
    %761 = vrot.lane.b32.xlu0 %v753, 96
    %v762 = vpop.permute.xlu0 %761
    %s764 = scalar_lea.vmem [#allocation4], 10
    %765 = vst.msk [vmem:[%s764] sm:$0x3] %vm410, %v762
    %v766 = vpack.c.bf16 %v672, %v672
    %v767 = vld [vmem:[#allocation11] sm:$0xf]
    %v768 = vld [vmem:[#allocation11 + $0x4] sm:$0xf]
    %v769 = vld [vmem:[#allocation11 + $0x8] sm:$0xf]
    %v770 = vld [vmem:[#allocation11 + $0xc] sm:$0xf]
    %v771 = vld [vmem:[%s4] sm:$0x1]
    %v773 = vperm.slane %v771, 0
    %776 = vrot.lane.b32.xlu0 %v766, 96
    %v777 = vpop.permute.xlu0 %776
    %v782 = vunpack.c.l.b16 %v767
    %v783 = vunpack.c.l.b16 %v768
    %v784 = vunpack.c.l.b16 %v769
    %v785 = vunpack.c.l.b16 %v770
    %v786 = vpack.c.b16 %v783, %v782
    %v787 = vpack.c.b16 %v785, %v784
    %v791 = vsel %vm137, %v777, 0
    %793 = vmatpush.bf16.msra.mxu0 0
    %794 = vmatpush.bf16.msra.mxu0 0
    %795 = vmatpush.bf16.msra.mxu0 0
    %796 = vmatpush.bf16.msra.mxu0 0
    %797 = vmatpush.bf16.msra.mxu0 0
    %798 = vmatpush.bf16.msra.mxu0 0
    %799 = vmatpush.bf16.msra.mxu0 %v787
    %800 = vmatpush.bf16.msra.mxu0 %v786
    %801 = vmatmul.bf16.gmra.mxu0 %v791
    %v802 = vpop.f32.mrf.mxu0
    %v803 = vadd.f32 %v773, %v802
    %v804 = vpop.f32.mrf.mxu0
    %805 = vdwg.mxu0
    %s806 = scalar_lea.vmem [#allocation2], 6
    %v807 = vld [vmem:[%s806] sm:$0x3]
    %v808 = vadd.f32 %v807, %v803
    %v809 = vxor.u32 %v808, 2147483648
    %v810 = vmul.f32 %v809, 1.442695
    %v811 = vpow.pop %v810
    %v812 = vadd.f32 %v811, 1.0
    %v813 = vrcp.pop %v812
    %v814 = vmul.f32 %v812, %v813
    %v815 = vsub.f32 1.0, %v814
    %v816 = vmul.f32 %v813, %v815
    %v817 = vadd.f32 %v813, %v816
    %vm818 = vweird.f32 %v812
    %vm819 = vweird.f32 %v813
    %vm820 = vmor %vm818, %vm819
    %v821 = vsel %vm820, %v813, %v817
    %v822 = vand.u32 2147483647, %v812
    %vm823 = vcmp.eq.f32.partialorder %v822, 8.507059e+37
    %v824 = vand.u32 %v812, 2147483648
    %v825 = vor.u32 1.1754944e-38, %v824
    %v826 = vsel %vm823, %v825, %v821
    %v827 = vmul.f32 1.0, %v826
    %829 = vrot.lane.b32.xlu0 %v803, 64
    %v830 = vpop.permute.xlu0 %829
    %v832 = vmul.f32 %v827, %v830
    %834 = vrot.lane.b32.xlu0 %v832, 64
    %v835 = vpop.permute.xlu0 %834
    %v837 = vadd.f32 %v807, %v835
    %v838 = vtanh.pop %v837
    %v839 = vsub.f32 1.0, %v827
    %841 = vrot.lane.b32.xlu0 %v838, 96
    %v842 = vpop.permute.xlu0 %841
    %v844 = vmul.f32 %v839, %v842
    %v845 = vmul.f32 %v827, %v672
    %v846 = vadd.f32 %v844, %v845
    %v847 = vpack.c.bf16 %v753, %v753
    %v848 = vld [vmem:[%s330] sm:$0xf]
    %v849 = vld [vmem:[%s330 + $0x4] sm:$0xf]
    %v850 = vld [vmem:[%s330 + $0x8] sm:$0xf]
    %v851 = vld [vmem:[%s330 + $0xc] sm:$0xf]
    %v852 = vld [vmem:[%s335] sm:$0x1]
    %v854 = vperm.slane %v852, 0
    %857 = vrot.lane.b32.xlu0 %v847, 96
    %v858 = vpop.permute.xlu0 %857
    %v863 = vunpack.c.l.b16 %v848
    %v864 = vunpack.c.l.b16 %v849
    %v865 = vunpack.c.l.b16 %v850
    %v866 = vunpack.c.l.b16 %v851
    %v867 = vpack.c.b16 %v864, %v863
    %v868 = vpack.c.b16 %v866, %v865
    %v872 = vsel %vm137, %v858, 0
    %874 = vmatpush.bf16.msra.mxu0 0
    %875 = vmatpush.bf16.msra.mxu0 0
    %876 = vmatpush.bf16.msra.mxu0 0
    %877 = vmatpush.bf16.msra.mxu0 0
    %878 = vmatpush.bf16.msra.mxu0 0
    %879 = vmatpush.bf16.msra.mxu0 0
    %880 = vmatpush.bf16.msra.mxu0 %v868
    %881 = vmatpush.bf16.msra.mxu0 %v867
    %882 = vmatmul.bf16.gmra.mxu0 %v872
    %v883 = vpop.f32.mrf.mxu0
    %v884 = vadd.f32 %v854, %v883
    %v885 = vpop.f32.mrf.mxu0
    %886 = vdwg.mxu0
    %s887 = scalar_lea.vmem [#allocation2], 24
    %v888 = vld [vmem:[%s887] sm:$0x3]
    %v889 = vadd.f32 %v888, %v884
    %v890 = vxor.u32 %v889, 2147483648
    %v891 = vmul.f32 %v890, 1.442695
    %v892 = vpow.pop %v891
    %v893 = vadd.f32 %v892, 1.0
    %v894 = vrcp.pop %v893
    %v895 = vmul.f32 %v893, %v894
    %v896 = vsub.f32 1.0, %v895
    %v897 = vmul.f32 %v894, %v896
    %v898 = vadd.f32 %v894, %v897
    %vm899 = vweird.f32 %v893
    %vm900 = vweird.f32 %v894
    %vm901 = vmor %vm899, %vm900
    %v902 = vsel %vm901, %v894, %v898
    %v903 = vand.u32 2147483647, %v893
    %vm904 = vcmp.eq.f32.partialorder %v903, 8.507059e+37
    %v905 = vand.u32 %v893, 2147483648
    %v906 = vor.u32 1.1754944e-38, %v905
    %v907 = vsel %vm904, %v906, %v902
    %v908 = vmul.f32 1.0, %v907
    %910 = vrot.lane.b32.xlu0 %v884, 64
    %v911 = vpop.permute.xlu0 %910
    %v913 = vmul.f32 %v908, %v911
    %915 = vrot.lane.b32.xlu0 %v913, 64
    %v916 = vpop.permute.xlu0 %915
    %v918 = vadd.f32 %v888, %v916
    %v919 = vtanh.pop %v918
    %v920 = vsub.f32 1.0, %v908
    %922 = vrot.lane.b32.xlu0 %v919, 96
    %v923 = vpop.permute.xlu0 %922
    %v925 = vmul.f32 %v920, %v923
    %v926 = vmul.f32 %v908, %v753
    %v927 = vadd.f32 %v925, %v926
    %929 = vrot.lane.b32.xlu0 %v846, 96
    %v930 = vpop.permute.xlu0 %929
    %s932 = scalar_lea.vmem [#allocation3], 6
    %933 = vst.msk [vmem:[%s932] sm:$0x3] %vm410, %v930
    %935 = vrot.lane.b32.xlu0 %v927, 96
    %v936 = vpop.permute.xlu0 %935
    %s938 = scalar_lea.vmem [#allocation4], 8
    %939 = vst.msk [vmem:[%s938] sm:$0x3] %vm410, %v936
    %v940 = vpack.c.bf16 %v846, %v846
    %v941 = vld [vmem:[#allocation11] sm:$0xf]
    %v942 = vld [vmem:[#allocation11 + $0x4] sm:$0xf]
    %v943 = vld [vmem:[#allocation11 + $0x8] sm:$0xf]
    %v944 = vld [vmem:[#allocation11 + $0xc] sm:$0xf]
    %v945 = vld [vmem:[%s4] sm:$0x1]
    %v947 = vperm.slane %v945, 0
    %950 = vrot.lane.b32.xlu0 %v940, 96
    %v951 = vpop.permute.xlu0 %950
    %v956 = vunpack.c.l.b16 %v941
    %v957 = vunpack.c.l.b16 %v942
    %v958 = vunpack.c.l.b16 %v943
    %v959 = vunpack.c.l.b16 %v944
    %v960 = vpack.c.b16 %v957, %v956
    %v961 = vpack.c.b16 %v959, %v958
    %v965 = vsel %vm137, %v951, 0
    %967 = vmatpush.bf16.msra.mxu0 0
    %968 = vmatpush.bf16.msra.mxu0 0
    %969 = vmatpush.bf16.msra.mxu0 0
    %970 = vmatpush.bf16.msra.mxu0 0
    %971 = vmatpush.bf16.msra.mxu0 0
    %972 = vmatpush.bf16.msra.mxu0 0
    %973 = vmatpush.bf16.msra.mxu0 %v961
    %974 = vmatpush.bf16.msra.mxu0 %v960
    %975 = vmatmul.bf16.gmra.mxu0 %v965
    %v976 = vpop.f32.mrf.mxu0
    %v977 = vadd.f32 %v947, %v976
    %v978 = vpop.f32.mrf.mxu0
    %979 = vdwg.mxu0
    %s980 = scalar_lea.vmem [#allocation2], 8
    %v981 = vld [vmem:[%s980] sm:$0x3]
    %v982 = vadd.f32 %v981, %v977
    %v983 = vxor.u32 %v982, 2147483648
    %v984 = vmul.f32 %v983, 1.442695
    %v985 = vpow.pop %v984
    %v986 = vadd.f32 %v985, 1.0
    %v987 = vrcp.pop %v986
    %v988 = vmul.f32 %v986, %v987
    %v989 = vsub.f32 1.0, %v988
    %v990 = vmul.f32 %v987, %v989
    %v991 = vadd.f32 %v987, %v990
    %vm992 = vweird.f32 %v986
    %vm993 = vweird.f32 %v987
    %vm994 = vmor %vm992, %vm993
    %v995 = vsel %vm994, %v987, %v991
    %v996 = vand.u32 2147483647, %v986
    %vm997 = vcmp.eq.f32.partialorder %v996, 8.507059e+37
    %v998 = vand.u32 %v986, 2147483648
    %v999 = vor.u32 1.1754944e-38, %v998
    %v1000 = vsel %vm997, %v999, %v995
    %v1001 = vmul.f32 1.0, %v1000
    %1003 = vrot.lane.b32.xlu0 %v977, 64
    %v1004 = vpop.permute.xlu0 %1003
    %v1006 = vmul.f32 %v1001, %v1004
    %1008 = vrot.lane.b32.xlu0 %v1006, 64
    %v1009 = vpop.permute.xlu0 %1008
    %v1011 = vadd.f32 %v981, %v1009
    %v1012 = vtanh.pop %v1011
    %v1013 = vsub.f32 1.0, %v1001
    %1015 = vrot.lane.b32.xlu0 %v1012, 96
    %v1016 = vpop.permute.xlu0 %1015
    %v1018 = vmul.f32 %v1013, %v1016
    %v1019 = vmul.f32 %v1001, %v846
    %v1020 = vadd.f32 %v1018, %v1019
    %v1021 = vpack.c.bf16 %v927, %v927
    %v1022 = vld [vmem:[%s330] sm:$0xf]
    %v1023 = vld [vmem:[%s330 + $0x4] sm:$0xf]
    %v1024 = vld [vmem:[%s330 + $0x8] sm:$0xf]
    %v1025 = vld [vmem:[%s330 + $0xc] sm:$0xf]
    %v1026 = vld [vmem:[%s335] sm:$0x1]
    %v1028 = vperm.slane %v1026, 0
    %1031 = vrot.lane.b32.xlu0 %v1021, 96
    %v1032 = vpop.permute.xlu0 %1031
    %v1037 = vunpack.c.l.b16 %v1022
    %v1038 = vunpack.c.l.b16 %v1023
    %v1039 = vunpack.c.l.b16 %v1024
    %v1040 = vunpack.c.l.b16 %v1025
    %v1041 = vpack.c.b16 %v1038, %v1037
    %v1042 = vpack.c.b16 %v1040, %v1039
    %v1046 = vsel %vm137, %v1032, 0
    %1048 = vmatpush.bf16.msra.mxu0 0
    %1049 = vmatpush.bf16.msra.mxu0 0
    %1050 = vmatpush.bf16.msra.mxu0 0
    %1051 = vmatpush.bf16.msra.mxu0 0
    %1052 = vmatpush.bf16.msra.mxu0 0
    %1053 = vmatpush.bf16.msra.mxu0 0
    %1054 = vmatpush.bf16.msra.mxu0 %v1042
    %1055 = vmatpush.bf16.msra.mxu0 %v1041
    %1056 = vmatmul.bf16.gmra.mxu0 %v1046
    %v1057 = vpop.f32.mrf.mxu0
    %v1058 = vadd.f32 %v1028, %v1057
    %v1059 = vpop.f32.mrf.mxu0
    %1060 = vdwg.mxu0
    %s1061 = scalar_lea.vmem [#allocation2], 22
    %v1062 = vld [vmem:[%s1061] sm:$0x3]
    %v1063 = vadd.f32 %v1062, %v1058
    %v1064 = vxor.u32 %v1063, 2147483648
    %v1065 = vmul.f32 %v1064, 1.442695
    %v1066 = vpow.pop %v1065
    %v1067 = vadd.f32 %v1066, 1.0
    %v1068 = vrcp.pop %v1067
    %v1069 = vmul.f32 %v1067, %v1068
    %v1070 = vsub.f32 1.0, %v1069
    %v1071 = vmul.f32 %v1068, %v1070
    %v1072 = vadd.f32 %v1068, %v1071
    %vm1073 = vweird.f32 %v1067
    %vm1074 = vweird.f32 %v1068
    %vm1075 = vmor %vm1073, %vm1074
    %v1076 = vsel %vm1075, %v1068, %v1072
    %v1077 = vand.u32 2147483647, %v1067
    %vm1078 = vcmp.eq.f32.partialorder %v1077, 8.507059e+37
    %v1079 = vand.u32 %v1067, 2147483648
    %v1080 = vor.u32 1.1754944e-38, %v1079
    %v1081 = vsel %vm1078, %v1080, %v1076
    %v1082 = vmul.f32 1.0, %v1081
    %1084 = vrot.lane.b32.xlu0 %v1058, 64
    %v1085 = vpop.permute.xlu0 %1084
    %v1087 = vmul.f32 %v1082, %v1085
    %1089 = vrot.lane.b32.xlu0 %v1087, 64
    %v1090 = vpop.permute.xlu0 %1089
    %v1092 = vadd.f32 %v1062, %v1090
    %v1093 = vtanh.pop %v1092
    %v1094 = vsub.f32 1.0, %v1082
    %1096 = vrot.lane.b32.xlu0 %v1093, 96
    %v1097 = vpop.permute.xlu0 %1096
    %v1099 = vmul.f32 %v1094, %v1097
    %v1100 = vmul.f32 %v1082, %v927
    %v1101 = vadd.f32 %v1099, %v1100
    %1103 = vrot.lane.b32.xlu0 %v1020, 96
    %v1104 = vpop.permute.xlu0 %1103
    %s1106 = scalar_lea.vmem [#allocation3], 8
    %1107 = vst.msk [vmem:[%s1106] sm:$0x3] %vm410, %v1104
    %1109 = vrot.lane.b32.xlu0 %v1101, 96
    %v1110 = vpop.permute.xlu0 %1109
    %s1112 = scalar_lea.vmem [#allocation4], 6
    %1113 = vst.msk [vmem:[%s1112] sm:$0x3] %vm410, %v1110
    %v1114 = vpack.c.bf16 %v1020, %v1020
    %v1115 = vld [vmem:[#allocation11] sm:$0xf]
    %v1116 = vld [vmem:[#allocation11 + $0x4] sm:$0xf]
    %v1117 = vld [vmem:[#allocation11 + $0x8] sm:$0xf]
    %v1118 = vld [vmem:[#allocation11 + $0xc] sm:$0xf]
    %v1119 = vld [vmem:[%s4] sm:$0x1]
    %v1121 = vperm.slane %v1119, 0
    %1124 = vrot.lane.b32.xlu0 %v1114, 96
    %v1125 = vpop.permute.xlu0 %1124
    %v1130 = vunpack.c.l.b16 %v1115
    %v1131 = vunpack.c.l.b16 %v1116
    %v1132 = vunpack.c.l.b16 %v1117
    %v1133 = vunpack.c.l.b16 %v1118
    %v1134 = vpack.c.b16 %v1131, %v1130
    %v1135 = vpack.c.b16 %v1133, %v1132
    %v1139 = vsel %vm137, %v1125, 0
    %1141 = vmatpush.bf16.msra.mxu0 0
    %1142 = vmatpush.bf16.msra.mxu0 0
    %1143 = vmatpush.bf16.msra.mxu0 0
    %1144 = vmatpush.bf16.msra.mxu0 0
    %1145 = vmatpush.bf16.msra.mxu0 0
    %1146 = vmatpush.bf16.msra.mxu0 0
    %1147 = vmatpush.bf16.msra.mxu0 %v1135
    %1148 = vmatpush.bf16.msra.mxu0 %v1134
    %1149 = vmatmul.bf16.gmra.mxu0 %v1139
    %v1150 = vpop.f32.mrf.mxu0
    %v1151 = vadd.f32 %v1121, %v1150
    %v1152 = vpop.f32.mrf.mxu0
    %1153 = vdwg.mxu0
    %s1154 = scalar_lea.vmem [#allocation2], 10
    %v1155 = vld [vmem:[%s1154] sm:$0x3]
    %v1156 = vadd.f32 %v1155, %v1151
    %v1157 = vxor.u32 %v1156, 2147483648
    %v1158 = vmul.f32 %v1157, 1.442695
    %v1159 = vpow.pop %v1158
    %v1160 = vadd.f32 %v1159, 1.0
    %v1161 = vrcp.pop %v1160
    %v1162 = vmul.f32 %v1160, %v1161
    %v1163 = vsub.f32 1.0, %v1162
    %v1164 = vmul.f32 %v1161, %v1163
    %v1165 = vadd.f32 %v1161, %v1164
    %vm1166 = vweird.f32 %v1160
    %vm1167 = vweird.f32 %v1161
    %vm1168 = vmor %vm1166, %vm1167
    %v1169 = vsel %vm1168, %v1161, %v1165
    %v1170 = vand.u32 2147483647, %v1160
    %vm1171 = vcmp.eq.f32.partialorder %v1170, 8.507059e+37
    %v1172 = vand.u32 %v1160, 2147483648
    %v1173 = vor.u32 1.1754944e-38, %v1172
    %v1174 = vsel %vm1171, %v1173, %v1169
    %v1175 = vmul.f32 1.0, %v1174
    %1177 = vrot.lane.b32.xlu0 %v1151, 64
    %v1178 = vpop.permute.xlu0 %1177
    %v1180 = vmul.f32 %v1175, %v1178
    %1182 = vrot.lane.b32.xlu0 %v1180, 64
    %v1183 = vpop.permute.xlu0 %1182
    %v1185 = vadd.f32 %v1155, %v1183
    %v1186 = vtanh.pop %v1185
    %v1187 = vsub.f32 1.0, %v1175
    %1189 = vrot.lane.b32.xlu0 %v1186, 96
    %v1190 = vpop.permute.xlu0 %1189
    %v1192 = vmul.f32 %v1187, %v1190
    %v1193 = vmul.f32 %v1175, %v1020
    %v1194 = vadd.f32 %v1192, %v1193
    %v1195 = vpack.c.bf16 %v1101, %v1101
    %v1196 = vld [vmem:[%s330] sm:$0xf]
    %v1197 = vld [vmem:[%s330 + $0x4] sm:$0xf]
    %v1198 = vld [vmem:[%s330 + $0x8] sm:$0xf]
    %v1199 = vld [vmem:[%s330 + $0xc] sm:$0xf]
    %v1200 = vld [vmem:[%s335] sm:$0x1]
    %v1202 = vperm.slane %v1200, 0
    %1205 = vrot.lane.b32.xlu0 %v1195, 96
    %v1206 = vpop.permute.xlu0 %1205
    %v1211 = vunpack.c.l.b16 %v1196
    %v1212 = vunpack.c.l.b16 %v1197
    %v1213 = vunpack.c.l.b16 %v1198
    %v1214 = vunpack.c.l.b16 %v1199
    %v1215 = vpack.c.b16 %v1212, %v1211
    %v1216 = vpack.c.b16 %v1214, %v1213
    %v1220 = vsel %vm137, %v1206, 0
    %1222 = vmatpush.bf16.msra.mxu0 0
    %1223 = vmatpush.bf16.msra.mxu0 0
    %1224 = vmatpush.bf16.msra.mxu0 0
    %1225 = vmatpush.bf16.msra.mxu0 0
    %1226 = vmatpush.bf16.msra.mxu0 0
    %1227 = vmatpush.bf16.msra.mxu0 0
    %1228 = vmatpush.bf16.msra.mxu0 %v1216
    %1229 = vmatpush.bf16.msra.mxu0 %v1215
    %1230 = vmatmul.bf16.gmra.mxu0 %v1220
    %v1231 = vpop.f32.mrf.mxu0
    %v1232 = vadd.f32 %v1202, %v1231
    %v1233 = vpop.f32.mrf.mxu0
    %1234 = vdwg.mxu0
    %s1235 = scalar_lea.vmem [#allocation2], 20
    %v1236 = vld [vmem:[%s1235] sm:$0x3]
    %v1237 = vadd.f32 %v1236, %v1232
    %v1238 = vxor.u32 %v1237, 2147483648
    %v1239 = vmul.f32 %v1238, 1.442695
    %v1240 = vpow.pop %v1239
    %v1241 = vadd.f32 %v1240, 1.0
    %v1242 = vrcp.pop %v1241
    %v1243 = vmul.f32 %v1241, %v1242
    %v1244 = vsub.f32 1.0, %v1243
    %v1245 = vmul.f32 %v1242, %v1244
    %v1246 = vadd.f32 %v1242, %v1245
    %vm1247 = vweird.f32 %v1241
    %vm1248 = vweird.f32 %v1242
    %vm1249 = vmor %vm1247, %vm1248
    %v1250 = vsel %vm1249, %v1242, %v1246
    %v1251 = vand.u32 2147483647, %v1241
    %vm1252 = vcmp.eq.f32.partialorder %v1251, 8.507059e+37
    %v1253 = vand.u32 %v1241, 2147483648
    %v1254 = vor.u32 1.1754944e-38, %v1253
    %v1255 = vsel %vm1252, %v1254, %v1250
    %v1256 = vmul.f32 1.0, %v1255
    %1258 = vrot.lane.b32.xlu0 %v1232, 64
    %v1259 = vpop.permute.xlu0 %1258
    %v1261 = vmul.f32 %v1256, %v1259
    %1263 = vrot.lane.b32.xlu0 %v1261, 64
    %v1264 = vpop.permute.xlu0 %1263
    %v1266 = vadd.f32 %v1236, %v1264
    %v1267 = vtanh.pop %v1266
    %v1268 = vsub.f32 1.0, %v1256
    %1270 = vrot.lane.b32.xlu0 %v1267, 96
    %v1271 = vpop.permute.xlu0 %1270
    %v1273 = vmul.f32 %v1268, %v1271
    %v1274 = vmul.f32 %v1256, %v1101
    %v1275 = vadd.f32 %v1273, %v1274
    %1277 = vrot.lane.b32.xlu0 %v1194, 96
    %v1278 = vpop.permute.xlu0 %1277
    %s1280 = scalar_lea.vmem [#allocation3], 10
    %1281 = vst.msk [vmem:[%s1280] sm:$0x3] %vm410, %v1278
    %1283 = vrot.lane.b32.xlu0 %v1275, 96
    %v1284 = vpop.permute.xlu0 %1283
    %s1286 = scalar_lea.vmem [#allocation4], 4
    %1287 = vst.msk [vmem:[%s1286] sm:$0x3] %vm410, %v1284
    %v1288 = vpack.c.bf16 %v1194, %v1194
    %v1289 = vld [vmem:[#allocation11] sm:$0xf]
    %v1290 = vld [vmem:[#allocation11 + $0x4] sm:$0xf]
    %v1291 = vld [vmem:[#allocation11 + $0x8] sm:$0xf]
    %v1292 = vld [vmem:[#allocation11 + $0xc] sm:$0xf]
    %v1293 = vld [vmem:[%s4] sm:$0x1]
    %v1295 = vperm.slane %v1293, 0
    %1298 = vrot.lane.b32.xlu0 %v1288, 96
    %v1299 = vpop.permute.xlu0 %1298
    %v1304 = vunpack.c.l.b16 %v1289
    %v1305 = vunpack.c.l.b16 %v1290
    %v1306 = vunpack.c.l.b16 %v1291
    %v1307 = vunpack.c.l.b16 %v1292
    %v1308 = vpack.c.b16 %v1305, %v1304
    %v1309 = vpack.c.b16 %v1307, %v1306
    %v1313 = vsel %vm137, %v1299, 0
    %1315 = vmatpush.bf16.msra.mxu0 0
    %1316 = vmatpush.bf16.msra.mxu0 0
    %1317 = vmatpush.bf16.msra.mxu0 0
    %1318 = vmatpush.bf16.msra.mxu0 0
    %1319 = vmatpush.bf16.msra.mxu0 0
    %1320 = vmatpush.bf16.msra.mxu0 0
    %1321 = vmatpush.bf16.msra.mxu0 %v1309
    %1322 = vmatpush.bf16.msra.mxu0 %v1308
    %1323 = vmatmul.bf16.gmra.mxu0 %v1313
    %v1324 = vpop.f32.mrf.mxu0
    %v1325 = vadd.f32 %v1295, %v1324
    %v1326 = vpop.f32.mrf.mxu0
    %1327 = vdwg.mxu0
    %s1328 = scalar_lea.vmem [#allocation2], 12
    %v1329 = vld [vmem:[%s1328] sm:$0x3]
    %v1330 = vadd.f32 %v1329, %v1325
    %v1331 = vxor.u32 %v1330, 2147483648
    %v1332 = vmul.f32 %v1331, 1.442695
    %v1333 = vpow.pop %v1332
    %v1334 = vadd.f32 %v1333, 1.0
    %v1335 = vrcp.pop %v1334
    %v1336 = vmul.f32 %v1334, %v1335
    %v1337 = vsub.f32 1.0, %v1336
    %v1338 = vmul.f32 %v1335, %v1337
    %v1339 = vadd.f32 %v1335, %v1338
    %vm1340 = vweird.f32 %v1334
    %vm1341 = vweird.f32 %v1335
    %vm1342 = vmor %vm1340, %vm1341
    %v1343 = vsel %vm1342, %v1335, %v1339
    %v1344 = vand.u32 2147483647, %v1334
    %vm1345 = vcmp.eq.f32.partialorder %v1344, 8.507059e+37
    %v1346 = vand.u32 %v1334, 2147483648
    %v1347 = vor.u32 1.1754944e-38, %v1346
    %v1348 = vsel %vm1345, %v1347, %v1343
    %v1349 = vmul.f32 1.0, %v1348
    %1351 = vrot.lane.b32.xlu0 %v1325, 64
    %v1352 = vpop.permute.xlu0 %1351
    %v1354 = vmul.f32 %v1349, %v1352
    %1356 = vrot.lane.b32.xlu0 %v1354, 64
    %v1357 = vpop.permute.xlu0 %1356
    %v1359 = vadd.f32 %v1329, %v1357
    %v1360 = vtanh.pop %v1359
    %v1361 = vsub.f32 1.0, %v1349
    %1363 = vrot.lane.b32.xlu0 %v1360, 96
    %v1364 = vpop.permute.xlu0 %1363
    %v1366 = vmul.f32 %v1361, %v1364
    %v1367 = vmul.f32 %v1349, %v1194
    %v1368 = vadd.f32 %v1366, %v1367
    %v1369 = vpack.c.bf16 %v1275, %v1275
    %v1370 = vld [vmem:[%s330] sm:$0xf]
    %v1371 = vld [vmem:[%s330 + $0x4] sm:$0xf]
    %v1372 = vld [vmem:[%s330 + $0x8] sm:$0xf]
    %v1373 = vld [vmem:[%s330 + $0xc] sm:$0xf]
    %v1374 = vld [vmem:[%s335] sm:$0x1]
    %v1376 = vperm.slane %v1374, 0
    %1379 = vrot.lane.b32.xlu0 %v1369, 96
    %v1380 = vpop.permute.xlu0 %1379
    %v1385 = vunpack.c.l.b16 %v1370
    %v1386 = vunpack.c.l.b16 %v1371
    %v1387 = vunpack.c.l.b16 %v1372
    %v1388 = vunpack.c.l.b16 %v1373
    %v1389 = vpack.c.b16 %v1386, %v1385
    %v1390 = vpack.c.b16 %v1388, %v1387
    %v1394 = vsel %vm137, %v1380, 0
    %1396 = vmatpush.bf16.msra.mxu0 0
    %1397 = vmatpush.bf16.msra.mxu0 0
    %1398 = vmatpush.bf16.msra.mxu0 0
    %1399 = vmatpush.bf16.msra.mxu0 0
    %1400 = vmatpush.bf16.msra.mxu0 0
    %1401 = vmatpush.bf16.msra.mxu0 0
    %1402 = vmatpush.bf16.msra.mxu0 %v1390
    %1403 = vmatpush.bf16.msra.mxu0 %v1389
    %1404 = vmatmul.bf16.gmra.mxu0 %v1394
    %v1405 = vpop.f32.mrf.mxu0
    %v1406 = vadd.f32 %v1376, %v1405
    %v1407 = vpop.f32.mrf.mxu0
    %1408 = vdwg.mxu0
    %s1409 = scalar_lea.vmem [#allocation2], 18
    %v1410 = vld [vmem:[%s1409] sm:$0x3]
    %v1411 = vadd.f32 %v1410, %v1406
    %v1412 = vxor.u32 %v1411, 2147483648
    %v1413 = vmul.f32 %v1412, 1.442695
    %v1414 = vpow.pop %v1413
    %v1415 = vadd.f32 %v1414, 1.0
    %v1416 = vrcp.pop %v1415
    %v1417 = vmul.f32 %v1415, %v1416
    %v1418 = vsub.f32 1.0, %v1417
    %v1419 = vmul.f32 %v1416, %v1418
    %v1420 = vadd.f32 %v1416, %v1419
    %vm1421 = vweird.f32 %v1415
    %vm1422 = vweird.f32 %v1416
    %vm1423 = vmor %vm1421, %vm1422
    %v1424 = vsel %vm1423, %v1416, %v1420
    %v1425 = vand.u32 2147483647, %v1415
    %vm1426 = vcmp.eq.f32.partialorder %v1425, 8.507059e+37
    %v1427 = vand.u32 %v1415, 2147483648
    %v1428 = vor.u32 1.1754944e-38, %v1427
    %v1429 = vsel %vm1426, %v1428, %v1424
    %v1430 = vmul.f32 1.0, %v1429
    %1432 = vrot.lane.b32.xlu0 %v1406, 64
    %v1433 = vpop.permute.xlu0 %1432
    %v1435 = vmul.f32 %v1430, %v1433
    %1437 = vrot.lane.b32.xlu0 %v1435, 64
    %v1438 = vpop.permute.xlu0 %1437
    %v1440 = vadd.f32 %v1410, %v1438
    %v1441 = vtanh.pop %v1440
    %v1442 = vsub.f32 1.0, %v1430
    %1444 = vrot.lane.b32.xlu0 %v1441, 96
    %v1445 = vpop.permute.xlu0 %1444
    %v1447 = vmul.f32 %v1442, %v1445
    %v1448 = vmul.f32 %v1430, %v1275
    %v1449 = vadd.f32 %v1447, %v1448
    %1451 = vrot.lane.b32.xlu0 %v1368, 96
    %v1452 = vpop.permute.xlu0 %1451
    %s1454 = scalar_lea.vmem [#allocation3], 12
    %1455 = vst.msk [vmem:[%s1454] sm:$0x3] %vm410, %v1452
    %1457 = vrot.lane.b32.xlu0 %v1449, 96
    %v1458 = vpop.permute.xlu0 %1457
    %s1460 = scalar_lea.vmem [#allocation4], 2
    %1461 = vst.msk [vmem:[%s1460] sm:$0x3] %vm410, %v1458
    %v1462 = vpack.c.bf16 %v1368, %v1368
    %v1463 = vld [vmem:[#allocation11] sm:$0xf]
    %v1464 = vld [vmem:[#allocation11 + $0x4] sm:$0xf]
    %v1465 = vld [vmem:[#allocation11 + $0x8] sm:$0xf]
    %v1466 = vld [vmem:[#allocation11 + $0xc] sm:$0xf]
    %v1467 = vld [vmem:[%s4] sm:$0x1]
    %v1469 = vperm.slane %v1467, 0
    %1472 = vrot.lane.b32.xlu0 %v1462, 96
    %v1473 = vpop.permute.xlu0 %1472
    %v1478 = vunpack.c.l.b16 %v1463
    %v1479 = vunpack.c.l.b16 %v1464
    %v1480 = vunpack.c.l.b16 %v1465
    %v1481 = vunpack.c.l.b16 %v1466
    %v1482 = vpack.c.b16 %v1479, %v1478
    %v1483 = vpack.c.b16 %v1481, %v1480
    %v1487 = vsel %vm137, %v1473, 0
    %1489 = vmatpush.bf16.msra.mxu0 0
    %1490 = vmatpush.bf16.msra.mxu0 0
    %1491 = vmatpush.bf16.msra.mxu0 0
    %1492 = vmatpush.bf16.msra.mxu0 0
    %1493 = vmatpush.bf16.msra.mxu0 0
    %1494 = vmatpush.bf16.msra.mxu0 0
    %1495 = vmatpush.bf16.msra.mxu0 %v1483
    %1496 = vmatpush.bf16.msra.mxu0 %v1482
    %1497 = vmatmul.bf16.gmra.mxu0 %v1487
    %v1498 = vpop.f32.mrf.mxu0
    %v1499 = vadd.f32 %v1469, %v1498
    %v1500 = vpop.f32.mrf.mxu0
    %1501 = vdwg.mxu0
    %s1502 = scalar_lea.vmem [#allocation2], 14
    %v1503 = vld [vmem:[%s1502] sm:$0x3]
    %v1504 = vadd.f32 %v1503, %v1499
    %v1505 = vxor.u32 %v1504, 2147483648
    %v1506 = vmul.f32 %v1505, 1.442695
    %v1507 = vpow.pop %v1506
    %v1508 = vadd.f32 %v1507, 1.0
    %v1509 = vrcp.pop %v1508
    %v1510 = vmul.f32 %v1508, %v1509
    %v1511 = vsub.f32 1.0, %v1510
    %v1512 = vmul.f32 %v1509, %v1511
    %v1513 = vadd.f32 %v1509, %v1512
    %vm1514 = vweird.f32 %v1508
    %vm1515 = vweird.f32 %v1509
    %vm1516 = vmor %vm1514, %vm1515
    %v1517 = vsel %vm1516, %v1509, %v1513
    %v1518 = vand.u32 2147483647, %v1508
    %vm1519 = vcmp.eq.f32.partialorder %v1518, 8.507059e+37
    %v1520 = vand.u32 %v1508, 2147483648
    %v1521 = vor.u32 1.1754944e-38, %v1520
    %v1522 = vsel %vm1519, %v1521, %v1517
    %v1523 = vmul.f32 1.0, %v1522
    %1525 = vrot.lane.b32.xlu0 %v1499, 64
    %v1526 = vpop.permute.xlu0 %1525
    %v1528 = vmul.f32 %v1523, %v1526
    %1530 = vrot.lane.b32.xlu0 %v1528, 64
    %v1531 = vpop.permute.xlu0 %1530
    %v1533 = vadd.f32 %v1503, %v1531
    %v1534 = vtanh.pop %v1533
    %v1535 = vsub.f32 1.0, %v1523
    %1537 = vrot.lane.b32.xlu0 %v1534, 96
    %v1538 = vpop.permute.xlu0 %1537
    %v1540 = vmul.f32 %v1535, %v1538
    %v1541 = vmul.f32 %v1523, %v1368
    %v1542 = vadd.f32 %v1540, %v1541
    %v1543 = vpack.c.bf16 %v1449, %v1449
    %v1544 = vld [vmem:[%s330] sm:$0xf]
    %v1545 = vld [vmem:[%s330 + $0x4] sm:$0xf]
    %v1546 = vld [vmem:[%s330 + $0x8] sm:$0xf]
    %v1547 = vld [vmem:[%s330 + $0xc] sm:$0xf]
    %v1548 = vld [vmem:[%s335] sm:$0x1]
    %v1550 = vperm.slane %v1548, 0
    %1553 = vrot.lane.b32.xlu0 %v1543, 96
    %v1554 = vpop.permute.xlu0 %1553
    %v1559 = vunpack.c.l.b16 %v1544
    %v1560 = vunpack.c.l.b16 %v1545
    %v1561 = vunpack.c.l.b16 %v1546
    %v1562 = vunpack.c.l.b16 %v1547
    %v1563 = vpack.c.b16 %v1560, %v1559
    %v1564 = vpack.c.b16 %v1562, %v1561
    %v1568 = vsel %vm137, %v1554, 0
    %1570 = vmatpush.bf16.msra.mxu0 0
    %1571 = vmatpush.bf16.msra.mxu0 0
    %1572 = vmatpush.bf16.msra.mxu0 0
    %1573 = vmatpush.bf16.msra.mxu0 0
    %1574 = vmatpush.bf16.msra.mxu0 0
    %1575 = vmatpush.bf16.msra.mxu0 0
    %1576 = vmatpush.bf16.msra.mxu0 %v1564
    %1577 = vmatpush.bf16.msra.mxu0 %v1563
    %1578 = vmatmul.bf16.gmra.mxu0 %v1568
    %v1579 = vpop.f32.mrf.mxu0
    %v1580 = vadd.f32 %v1550, %v1579
    %v1581 = vpop.f32.mrf.mxu0
    %1582 = vdwg.mxu0
    %v1583 = vld [vmem:[%s245] sm:$0x3]
    %v1584 = vadd.f32 %v1583, %v1580
    %v1585 = vxor.u32 %v1584, 2147483648
    %v1586 = vmul.f32 %v1585, 1.442695
    %v1587 = vpow.pop %v1586
    %v1588 = vadd.f32 %v1587, 1.0
    %v1589 = vrcp.pop %v1588
    %v1590 = vmul.f32 %v1588, %v1589
    %v1591 = vsub.f32 1.0, %v1590
    %v1592 = vmul.f32 %v1589, %v1591
    %v1593 = vadd.f32 %v1589, %v1592
    %vm1594 = vweird.f32 %v1588
    %vm1595 = vweird.f32 %v1589
    %vm1596 = vmor %vm1594, %vm1595
    %v1597 = vsel %vm1596, %v1589, %v1593
    %v1598 = vand.u32 2147483647, %v1588
    %vm1599 = vcmp.eq.f32.partialorder %v1598, 8.507059e+37
    %v1600 = vand.u32 %v1588, 2147483648
    %v1601 = vor.u32 1.1754944e-38, %v1600
    %v1602 = vsel %vm1599, %v1601, %v1597
    %v1603 = vmul.f32 1.0, %v1602
    %1605 = vrot.lane.b32.xlu0 %v1580, 64
    %v1606 = vpop.permute.xlu0 %1605
    %v1608 = vmul.f32 %v1603, %v1606
    %1610 = vrot.lane.b32.xlu0 %v1608, 64
    %v1611 = vpop.permute.xlu0 %1610
    %v1613 = vadd.f32 %v1583, %v1611
    %v1614 = vtanh.pop %v1613
    %v1615 = vsub.f32 1.0, %v1603
    %1617 = vrot.lane.b32.xlu0 %v1614, 96
    %v1618 = vpop.permute.xlu0 %1617
    %v1620 = vmul.f32 %v1615, %v1618
    %v1621 = vmul.f32 %v1603, %v1449
    %v1622 = vadd.f32 %v1620, %v1621
    %1624 = vrot.lane.b32.xlu0 %v1542, 96
    %v1625 = vpop.permute.xlu0 %1624
    %s1627 = scalar_lea.vmem [#allocation3], 14
    %1628 = vst.msk [vmem:[%s1627] sm:$0x3] %vm410, %v1625
    %1630 = vrot.lane.b32.xlu0 %v1622, 96
    %v1631 = vpop.permute.xlu0 %1630
    %1633 = vst.msk [vmem:[#allocation4] sm:$0x3] %vm410, %v1631
    %v1634 = vld [vmem:[#allocation3] sm:$0x3]
    %v1635 = vld [vmem:[#allocation3 + $0x2] sm:$0x3]
    %v1636 = vld [vmem:[#allocation3 + $0x4] sm:$0x3]
    %v1637 = vld [vmem:[#allocation3 + $0x6] sm:$0x3]
    %v1638 = vld [vmem:[#allocation3 + $0x8] sm:$0x3]
    %v1639 = vld [vmem:[#allocation3 + $0xa] sm:$0x3]
    %v1640 = vld [vmem:[#allocation3 + $0xc] sm:$0x3]
    %v1641 = vld [vmem:[#allocation3 + $0xe] sm:$0x3]
    %v1642 = vld [vmem:[#allocation4] sm:$0x3]
    %v1643 = vld [vmem:[#allocation4 + $0x2] sm:$0x3]
    %v1644 = vld [vmem:[#allocation4 + $0x4] sm:$0x3]
    %v1645 = vld [vmem:[#allocation4 + $0x6] sm:$0x3]
    %v1646 = vld [vmem:[#allocation4 + $0x8] sm:$0x3]
    %v1647 = vld [vmem:[#allocation4 + $0xa] sm:$0x3]
    %v1648 = vld [vmem:[#allocation4 + $0xc] sm:$0x3]
    %v1649 = vld [vmem:[#allocation4 + $0xe] sm:$0x3]
    %v1650 = vadd.f32 %v1634, %v1642
    %v1651 = vadd.f32 %v1635, %v1643
    %v1652 = vadd.f32 %v1636, %v1644
    %v1653 = vadd.f32 %v1637, %v1645
    %v1654 = vadd.f32 %v1638, %v1646
    %v1655 = vadd.f32 %v1639, %v1647
    %v1656 = vadd.f32 %v1640, %v1648
    %v1657 = vadd.f32 %v1641, %v1649
    %v1658 = vrot.slane %v1652, 4
    %vm1659 = vcmask 1047556
    %v1660 = vsel %vm1659, %v1658, %v1650
    %v1662 = vunpack.c.l.s4 1983009808
    %v1663 = vunpack.c.0.s8 %v1662
    %v1664 = vperm.slane %v1660, %v1663
    %v1665 = vrot.slane %v1653, 4
    %v1666 = vsel %vm1659, %v1665, %v1651
    %v1668 = vunpack.c.l.s4 1983009808
    %v1669 = vunpack.c.0.s8 %v1668
    %v1670 = vperm.slane %v1666, %v1669
    %v1671 = vrot.slane %v1656, 4
    %v1672 = vsel %vm1659, %v1671, %v1654
    %v1674 = vunpack.c.l.s4 1983009808
    %v1675 = vunpack.c.0.s8 %v1674
    %v1676 = vperm.slane %v1672, %v1675
    %v1677 = vrot.slane %v1657, 4
    %v1678 = vsel %vm1659, %v1677, %v1655
    %v1680 = vunpack.c.l.s4 1983009808
    %v1681 = vunpack.c.0.s8 %v1680
    %v1682 = vperm.slane %v1678, %v1681
    %v1683 = vrot.slane %v1670, 4
    %v1684 = vsel %vm1659, %v1683, %v1664
    %v1686 = vunpack.c.l.s4 1934713408
    %v1687 = vunpack.c.0.s8 %v1686
    %v1688 = vperm.slane %v1684, %v1687
    %v1689 = vrot.slane %v1682, 4
    %v1690 = vsel %vm1659, %v1689, %v1676
    %v1692 = vunpack.c.l.s4 1934713408
    %v1693 = vunpack.c.0.s8 %v1692
    %v1694 = vperm.slane %v1690, %v1693
    %v1695 = vrot.slane %v1694, 4
    %v1696 = vsel %vm1659, %v1695, %v1688
    %v1697 = vrot.slane %v1688, 4
    %v1698 = vsel %vm1659, %v1694, %v1697
    %1700 = vrot.lane.b32.xlu0 %v1698, 32
    %v1701 = vpop.permute.xlu0 %1700
    %v1703 = vsel %vm137, %v1696, %v1701
    %vm1704 = vcmask 523264
    %1705 = vst.msk [vmem:[#allocation13] sm:$0xff] %vm1704, %v1703
    // Predicated region
    $region38: #{tpu_custom_call.1} parent=1 // pred_check
      _
    $region39: #{tpu_custom_call.1} parent=1 // pred_check_branch
      %1707 = sbr.rel (0) target = $region41
    $region40: #{tpu_custom_call.1} parent=1 // pred_region
      %1709 = vsyncadd [#allocation7], 0
      %s1711 = sshll.u32 [#allocation13], 4
      %s1712 = int_to_ptr.vmem [resolvable:$true] %s1711
      %s1713 = sshll.u32 %s5, 4
      %s1714 = int_to_ptr.hbm [resolvable:$true] %s1713
      %1716 = dma.vmem_to_hbm [thread:$0]  %s1712, 128, %s1714, [#allocation7]
    $region41: #{tpu_custom_call.1} parent=1 // pred_fallthru
      _
    // Predicated region
    $region42: #{tpu_custom_call.1} parent=1 // pred_check
      _
    $region43: #{tpu_custom_call.1} parent=1 // pred_check_branch
      %1718 = sbr.rel (0) target = $region45
    $region44: #{tpu_custom_call.1} parent=1 // pred_region
      %1720 = dma.done [#allocation7], 128
    $region45: #{tpu_custom_call.1} parent=1 // pred_fallthru
      _
    %1721 = vsyncpa [#allocation6], 1
    %1722 = vsyncpa [#allocation9], 1
    %1723 = vsyncpa [#allocation12], 1
    %1724 = vsyncpa [#allocation7], 1

</llo_original>
